<compile_context>
chip_gen: v7x
topology: tpu7x:2x2x1
jax: 0.10.0
libtpu: 0.0.40
codegen_flags: <defaults>
</compile_context>

<pallas_src>
import math
from functools import partial

import jax
import jax.numpy as jnp
from jax import lax
from jax.experimental import pallas as pl
from jax.experimental.pallas import tpu as pltpu


def attention_kernel(x_ref, wq_ref, wk_ref, wv_ref, wo_ref, vec_ref, out_ref,
                     *, num_heads, head_dim, seq_len, batch_block, ln_eps):
    # x_ref / out_ref: (R, H) with R = batch_block * seq_len
    # w*_ref: (H, H) already in (in, out) layout -> canonical matmuls
    # vec_ref: (8, H): rows 0..5 = bq, bk, bv, bo, ln_gamma, ln_beta (rows 6,7 padding)
    x = x_ref[...]                       # keep input dtype: bf16-fed MXU when model is bf16
    dt = x.dtype
    x_f32 = x.astype(jnp.float32)

    vec = vec_ref[...].astype(jnp.float32)
    bq, bk, bv, bo = vec[0:1, :], vec[1:2, :], vec[2:3, :], vec[3:4, :]
    ln_g, ln_b = vec[4:5, :], vec[5:6, :]

    scale = 1.0 / math.sqrt(head_dim)

    # Q/K/V projections: one big (R,H)@(H,H) each, f32 accumulation on the MXU.
    q = ((jnp.dot(x, wq_ref[...], preferred_element_type=jnp.float32) + bq) * scale).astype(dt)
    k = (jnp.dot(x, wk_ref[...], preferred_element_type=jnp.float32) + bk).astype(dt)
    v = (jnp.dot(x, wv_ref[...], preferred_element_type=jnp.float32) + bv).astype(dt)

    # Per-batch-element, per-head attention; context stays a value (no VMEM scratch,
    # no masked per-head stores), reassembled with concatenates.
    ctx_rows = []
    for b in range(batch_block):                      # small static unroll (rows fit VMEM)
        r0 = b * seq_len
        qb = q[r0:r0 + seq_len, :]
        kb = k[r0:r0 + seq_len, :]
        vb = v[r0:r0 + seq_len, :]
        heads = []
        for h in range(num_heads):
            c0 = h * head_dim
            qh = qb[:, c0:c0 + head_dim]
            kh = kb[:, c0:c0 + head_dim]
            vh = vb[:, c0:c0 + head_dim]
            s = lax.dot_general(qh, kh, (((1,), (1,)), ((), ())),
                                preferred_element_type=jnp.float32)        # (S, S)
            m = jnp.max(s, axis=-1, keepdims=True)
            e = jnp.exp(s - m)
            p = e * pl.reciprocal(jnp.sum(e, axis=-1, keepdims=True), approx=True)
            heads.append(jnp.dot(p.astype(dt), vh,
                                 preferred_element_type=jnp.float32))      # (S, hd)
        ctx_rows.append(jnp.concatenate(heads, axis=-1) if num_heads > 1 else heads[0])
    ctx = jnp.concatenate(ctx_rows, axis=0) if batch_block > 1 else ctx_rows[0]  # (R, H)

    # VisualBertSelfOutput: dense -> (dropout no-op) -> residual -> LayerNorm.
    y = jnp.dot(ctx.astype(dt), wo_ref[...], preferred_element_type=jnp.float32) + bo + x_f32
    mean = jnp.mean(y, axis=-1, keepdims=True)
    var = jnp.mean(jnp.square(y - mean), axis=-1, keepdims=True)
    y = (y - mean) * lax.rsqrt(var + ln_eps)
    out_ref[...] = (y * ln_g + ln_b).astype(out_ref.dtype)   # single full-width store


def visual_bert_attention(hidden_states, params, *, num_heads, ln_eps=1e-12,
                          batch_block=None):
    """hidden_states: [B, S, H]; params: PyTorch-layout weights/biases.
    Returns attention_output: [B, S, H]."""
    B, S, H = hidden_states.shape
    assert H % num_heads == 0
    head_dim = H // num_heads
    wq, bq, wk, bk, wv, bv, wo, bo, ln_g, ln_b = params

    # One-time wrapper-side weight transposes -> (in, out) layout for canonical matmuls.
    wq_t, wk_t, wv_t, wo_t = wq.T, wk.T, wv.T, wo.T

    # Pack the six (H,) vectors into one (8, H) operand (rows 6,7 are padding).
    vec = jnp.concatenate(
        [jnp.stack([bq, bk, bv, bo, ln_g, ln_b], axis=0),
         jnp.zeros((2, H), dtype=bq.dtype)], axis=0)

    # Block several whole batch elements per grid step to fill the MXU M dimension at
    # small S.  (For v7x with tiny B one may prefer batch_block=1 to occupy both TCs.)
    if batch_block is None:
        batch_block = min(B, max(1, 256 // S))
        while B % batch_block:
            batch_block -= 1
    assert B % batch_block == 0
    R = batch_block * S                       # rows per grid step (multiple of S)
    grid = (B // batch_block,)

    x2d = hidden_states.reshape(B * S, H)

    kernel = partial(attention_kernel, num_heads=num_heads, head_dim=head_dim,
                     seq_len=S, batch_block=batch_block, ln_eps=ln_eps)

    row_spec = pl.BlockSpec((R, H), lambda i: (i, 0))
    w_spec = pl.BlockSpec((H, H), lambda i: (0, 0))      # grid-invariant
    v_spec = pl.BlockSpec((8, H), lambda i: (0, 0))      # grid-invariant

    a_bytes = hidden_states.dtype.itemsize
    w_bytes = wq.dtype.itemsize
    cost = pl.CostEstimate(
        flops=B * (8 * S * H * H + 4 * S * S * H),
        transcendentals=B * (num_heads * S * S + num_heads * S + S),
        bytes_accessed=a_bytes * 2 * B * S * H + w_bytes * (4 * H * H + 8 * H),
    )

    out2d = pl.pallas_call(
        kernel,
        out_shape=jax.ShapeDtypeStruct((B * S, H), hidden_states.dtype),
        grid=grid,
        in_specs=[row_spec, w_spec, w_spec, w_spec, w_spec, v_spec],
        out_specs=row_spec,
        compiler_params=pltpu.CompilerParams(
            dimension_semantics=("parallel",),
            vmem_limit_bytes=64 * 1024 * 1024,
        ),
        cost_estimate=cost,
    )(x2d, wq_t, wk_t, wv_t, wo_t, vec)
    return out2d.reshape(B, S, H)


def reference(hidden_states, params, *, num_heads, ln_eps=1e-12):
    """Pure-JAX reference matching the PyTorch VisualBertAttention forward (eval mode)."""
    wq, bq, wk, bk, wv, bv, wo, bo, ln_g, ln_b = params
    B, S, H = hidden_states.shape
    hd = H // num_heads
    x = hidden_states.astype(jnp.float32)

    q = x @ wq.T + bq
    k = x @ wk.T + bk
    v = x @ wv.T + bv

    def heads(t):
        return t.reshape(B, S, num_heads, hd).transpose(0, 2, 1, 3)

    qh, kh, vh = heads(q), heads(k), heads(v)
    scores = jnp.einsum('bhqd,bhkd->bhqk', qh, kh) / math.sqrt(hd)
    probs = jax.nn.softmax(scores, axis=-1)
    ctx = jnp.einsum('bhqk,bhkd->bhqd', probs, vh).transpose(0, 2, 1, 3).reshape(B, S, H)

    y = ctx @ wo.T + bo + x
    mean = y.mean(-1, keepdims=True)
    var = ((y - mean) ** 2).mean(-1, keepdims=True)
    y = (y - mean) / jnp.sqrt(var + ln_eps)
    return y * ln_g + ln_b


if __name__ == "__main__":
    # Small deterministic shapes consistent with the module: batch=2, seq=8, hidden=32, heads=4.
    B, S, H, NH = 2, 8, 32, 4

    key = jax.random.PRNGKey(0)
    keys = jax.random.split(key, 11)

    hidden_states = jax.random.normal(keys[0], (B, S, H), dtype=jnp.float32)
    wq = jax.random.normal(keys[1], (H, H), dtype=jnp.float32) * 0.05
    bq = jax.random.normal(keys[2], (H,), dtype=jnp.float32) * 0.02
    wk = jax.random.normal(keys[3], (H, H), dtype=jnp.float32) * 0.05
    bk = jax.random.normal(keys[4], (H,), dtype=jnp.float32) * 0.02
    wv = jax.random.normal(keys[5], (H, H), dtype=jnp.float32) * 0.05
    bv = jax.random.normal(keys[6], (H,), dtype=jnp.float32) * 0.02
    wo = jax.random.normal(keys[7], (H, H), dtype=jnp.float32) * 0.05
    bo = jax.random.normal(keys[8], (H,), dtype=jnp.float32) * 0.02
    ln_g = 1.0 + 0.05 * jax.random.normal(keys[9], (H,), dtype=jnp.float32)
    ln_b = 0.02 * jax.random.normal(keys[10], (H,), dtype=jnp.float32)

    params = (wq, bq, wk, bk, wv, bv, wo, bo, ln_g, ln_b)

    out = visual_bert_attention(hidden_states, params, num_heads=NH)
    out = jax.block_until_ready(out)

    ref = reference(hidden_states, params, num_heads=NH)

    assert out.shape == (B, S, H)
    assert jnp.allclose(out, ref, atol=2e-3, rtol=2e-3), float(jnp.max(jnp.abs(out - ref)))

    print("KERNEL_OK")
</pallas_src>

<mosaic_0001>
module attributes {stable_mosaic.version = 11 : i64} {
  func.func @attention_kernel(%arg0: i32, %arg1: memref<16x32xf32, #tpu.memory_space<vmem>>, %arg2: memref<32x32xf32, #tpu.memory_space<vmem>>, %arg3: memref<32x32xf32, #tpu.memory_space<vmem>>, %arg4: memref<32x32xf32, #tpu.memory_space<vmem>>, %arg5: memref<32x32xf32, #tpu.memory_space<vmem>>, %arg6: memref<8x32xf32, #tpu.memory_space<vmem>>, %arg7: memref<16x32xf32, #tpu.memory_space<vmem>>) attributes {dimension_semantics = [#tpu.dimension_semantics<parallel>], iteration_bounds = array<i64: 1>, scalar_prefetch = 0 : i64, scratch_operands = 0 : i64, tpu.core_type = #tpu.core_type<tc>, window_params = [{transform_indices = @transform_0, window_bounds = array<i64: 16, 32>}, {pipeline_mode = #tpu.pipeline_mode<synchronous>, transform_indices = @transform_1, window_bounds = array<i64: 32, 32>}, {pipeline_mode = #tpu.pipeline_mode<synchronous>, transform_indices = @transform_2, window_bounds = array<i64: 32, 32>}, {pipeline_mode = #tpu.pipeline_mode<synchronous>, transform_indices = @transform_3, window_bounds = array<i64: 32, 32>}, {pipeline_mode = #tpu.pipeline_mode<synchronous>, transform_indices = @transform_4, window_bounds = array<i64: 32, 32>}, {pipeline_mode = #tpu.pipeline_mode<synchronous>, transform_indices = @transform_5, window_bounds = array<i64: 8, 32>}, {transform_indices = @transform_6, window_bounds = array<i64: 16, 32>}]} {
    %c0 = arith.constant 0 : index
    %c0_0 = arith.constant 0 : index
    %0 = vector.load %arg1[%c0, %c0_0] : memref<16x32xf32, #tpu.memory_space<vmem>>, vector<16x32xf32>
    %c0_1 = arith.constant 0 : index
    %c0_2 = arith.constant 0 : index
    %1 = vector.load %arg6[%c0_1, %c0_2] : memref<8x32xf32, #tpu.memory_space<vmem>>, vector<8x32xf32>
    %2 = vector.extract_strided_slice %1 {offsets = [0, 0], sizes = [1, 32], strides = [1, 1]} : vector<8x32xf32> to vector<1x32xf32>
    %3 = vector.extract_strided_slice %1 {offsets = [1, 0], sizes = [1, 32], strides = [1, 1]} : vector<8x32xf32> to vector<1x32xf32>
    %4 = vector.extract_strided_slice %1 {offsets = [2, 0], sizes = [1, 32], strides = [1, 1]} : vector<8x32xf32> to vector<1x32xf32>
    %5 = vector.extract_strided_slice %1 {offsets = [3, 0], sizes = [1, 32], strides = [1, 1]} : vector<8x32xf32> to vector<1x32xf32>
    %6 = vector.extract_strided_slice %1 {offsets = [4, 0], sizes = [1, 32], strides = [1, 1]} : vector<8x32xf32> to vector<1x32xf32>
    %7 = vector.extract_strided_slice %1 {offsets = [5, 0], sizes = [1, 32], strides = [1, 1]} : vector<8x32xf32> to vector<1x32xf32>
    %c0_3 = arith.constant 0 : index
    %c0_4 = arith.constant 0 : index
    %8 = vector.load %arg2[%c0_3, %c0_4] : memref<32x32xf32, #tpu.memory_space<vmem>>, vector<32x32xf32>
    %cst = arith.constant dense<0.000000e+00> : vector<16x32xf32>
    %9 = tpu.matmul %0, %8, %cst {dimension_numbers = #tpu.dot_dimension_numbers<[1], [0], [0], [1], [0, 0, 1, 1], [], []>} : vector<16x32xf32>, vector<32x32xf32>, vector<16x32xf32> -> vector<16x32xf32>
    %10 = vector.broadcast %2 : vector<1x32xf32> to vector<16x32xf32>
    %11 = arith.addf %9, %10 : vector<16x32xf32>
    %cst_5 = arith.constant 0.353553385 : f32
    %12 = vector.broadcast %cst_5 : f32 to vector<16x32xf32>
    %13 = arith.mulf %11, %12 : vector<16x32xf32>
    %c0_6 = arith.constant 0 : index
    %c0_7 = arith.constant 0 : index
    %14 = vector.load %arg3[%c0_6, %c0_7] : memref<32x32xf32, #tpu.memory_space<vmem>>, vector<32x32xf32>
    %cst_8 = arith.constant dense<0.000000e+00> : vector<16x32xf32>
    %15 = tpu.matmul %0, %14, %cst_8 {dimension_numbers = #tpu.dot_dimension_numbers<[1], [0], [0], [1], [0, 0, 1, 1], [], []>} : vector<16x32xf32>, vector<32x32xf32>, vector<16x32xf32> -> vector<16x32xf32>
    %16 = vector.broadcast %3 : vector<1x32xf32> to vector<16x32xf32>
    %17 = arith.addf %15, %16 : vector<16x32xf32>
    %c0_9 = arith.constant 0 : index
    %c0_10 = arith.constant 0 : index
    %18 = vector.load %arg4[%c0_9, %c0_10] : memref<32x32xf32, #tpu.memory_space<vmem>>, vector<32x32xf32>
    %cst_11 = arith.constant dense<0.000000e+00> : vector<16x32xf32>
    %19 = tpu.matmul %0, %18, %cst_11 {dimension_numbers = #tpu.dot_dimension_numbers<[1], [0], [0], [1], [0, 0, 1, 1], [], []>} : vector<16x32xf32>, vector<32x32xf32>, vector<16x32xf32> -> vector<16x32xf32>
    %20 = vector.broadcast %4 : vector<1x32xf32> to vector<16x32xf32>
    %21 = arith.addf %19, %20 : vector<16x32xf32>
    %22 = vector.extract_strided_slice %13 {offsets = [0, 0], sizes = [8, 32], strides = [1, 1]} : vector<16x32xf32> to vector<8x32xf32>
    %23 = vector.extract_strided_slice %17 {offsets = [0, 0], sizes = [8, 32], strides = [1, 1]} : vector<16x32xf32> to vector<8x32xf32>
    %24 = vector.extract_strided_slice %21 {offsets = [0, 0], sizes = [8, 32], strides = [1, 1]} : vector<16x32xf32> to vector<8x32xf32>
    %25 = vector.extract_strided_slice %22 {offsets = [0, 0], sizes = [8, 8], strides = [1, 1]} : vector<8x32xf32> to vector<8x8xf32>
    %26 = vector.extract_strided_slice %23 {offsets = [0, 0], sizes = [8, 8], strides = [1, 1]} : vector<8x32xf32> to vector<8x8xf32>
    %27 = vector.extract_strided_slice %24 {offsets = [0, 0], sizes = [8, 8], strides = [1, 1]} : vector<8x32xf32> to vector<8x8xf32>
    %cst_12 = arith.constant dense<0.000000e+00> : vector<8x8xf32>
    %28 = tpu.matmul %25, %26, %cst_12 {dimension_numbers = #tpu.dot_dimension_numbers<[1], [1], [0], [0], [0, 0, 1, 0], [], []>} : vector<8x8xf32>, vector<8x8xf32>, vector<8x8xf32> -> vector<8x8xf32>
    %cst_13 = arith.constant dense<0xFF800000> : vector<8xf32>
    %29 = vector.multi_reduction <maximumf>, %28, %cst_13 [1] : vector<8x8xf32> to vector<8xf32>
    %30 = vector.shape_cast %29 : vector<8xf32> to vector<8x1xf32>
    %31 = vector.broadcast %30 : vector<8x1xf32> to vector<8x8xf32>
    %32 = arith.subf %28, %31 : vector<8x8xf32>
    %33 = math.exp %32 : vector<8x8xf32>
    %cst_14 = arith.constant dense<0.000000e+00> : vector<8xf32>
    %34 = vector.multi_reduction <add>, %33, %cst_14 [1] : vector<8x8xf32> to vector<8xf32>
    %35 = vector.shape_cast %34 : vector<8xf32> to vector<8x1xf32>
    %36 = tpu.reciprocal %35 {approx = true} : vector<8x1xf32> -> vector<8x1xf32>
    %37 = vector.broadcast %36 : vector<8x1xf32> to vector<8x8xf32>
    %38 = arith.mulf %33, %37 : vector<8x8xf32>
    %cst_15 = arith.constant dense<0.000000e+00> : vector<8x8xf32>
    %39 = tpu.matmul %38, %27, %cst_15 {dimension_numbers = #tpu.dot_dimension_numbers<[1], [0], [0], [1], [0, 0, 1, 1], [], []>} : vector<8x8xf32>, vector<8x8xf32>, vector<8x8xf32> -> vector<8x8xf32>
    %40 = vector.extract_strided_slice %22 {offsets = [0, 8], sizes = [8, 8], strides = [1, 1]} : vector<8x32xf32> to vector<8x8xf32>
    %41 = vector.extract_strided_slice %23 {offsets = [0, 8], sizes = [8, 8], strides = [1, 1]} : vector<8x32xf32> to vector<8x8xf32>
    %42 = vector.extract_strided_slice %24 {offsets = [0, 8], sizes = [8, 8], strides = [1, 1]} : vector<8x32xf32> to vector<8x8xf32>
    %cst_16 = arith.constant dense<0.000000e+00> : vector<8x8xf32>
    %43 = tpu.matmul %40, %41, %cst_16 {dimension_numbers = #tpu.dot_dimension_numbers<[1], [1], [0], [0], [0, 0, 1, 0], [], []>} : vector<8x8xf32>, vector<8x8xf32>, vector<8x8xf32> -> vector<8x8xf32>
    %cst_17 = arith.constant dense<0xFF800000> : vector<8xf32>
    %44 = vector.multi_reduction <maximumf>, %43, %cst_17 [1] : vector<8x8xf32> to vector<8xf32>
    %45 = vector.shape_cast %44 : vector<8xf32> to vector<8x1xf32>
    %46 = vector.broadcast %45 : vector<8x1xf32> to vector<8x8xf32>
    %47 = arith.subf %43, %46 : vector<8x8xf32>
    %48 = math.exp %47 : vector<8x8xf32>
    %cst_18 = arith.constant dense<0.000000e+00> : vector<8xf32>
    %49 = vector.multi_reduction <add>, %48, %cst_18 [1] : vector<8x8xf32> to vector<8xf32>
    %50 = vector.shape_cast %49 : vector<8xf32> to vector<8x1xf32>
    %51 = tpu.reciprocal %50 {approx = true} : vector<8x1xf32> -> vector<8x1xf32>
    %52 = vector.broadcast %51 : vector<8x1xf32> to vector<8x8xf32>
    %53 = arith.mulf %48, %52 : vector<8x8xf32>
    %cst_19 = arith.constant dense<0.000000e+00> : vector<8x8xf32>
    %54 = tpu.matmul %53, %42, %cst_19 {dimension_numbers = #tpu.dot_dimension_numbers<[1], [0], [0], [1], [0, 0, 1, 1], [], []>} : vector<8x8xf32>, vector<8x8xf32>, vector<8x8xf32> -> vector<8x8xf32>
    %55 = vector.extract_strided_slice %22 {offsets = [0, 16], sizes = [8, 8], strides = [1, 1]} : vector<8x32xf32> to vector<8x8xf32>
    %56 = vector.extract_strided_slice %23 {offsets = [0, 16], sizes = [8, 8], strides = [1, 1]} : vector<8x32xf32> to vector<8x8xf32>
    %57 = vector.extract_strided_slice %24 {offsets = [0, 16], sizes = [8, 8], strides = [1, 1]} : vector<8x32xf32> to vector<8x8xf32>
    %cst_20 = arith.constant dense<0.000000e+00> : vector<8x8xf32>
    %58 = tpu.matmul %55, %56, %cst_20 {dimension_numbers = #tpu.dot_dimension_numbers<[1], [1], [0], [0], [0, 0, 1, 0], [], []>} : vector<8x8xf32>, vector<8x8xf32>, vector<8x8xf32> -> vector<8x8xf32>
    %cst_21 = arith.constant dense<0xFF800000> : vector<8xf32>
    %59 = vector.multi_reduction <maximumf>, %58, %cst_21 [1] : vector<8x8xf32> to vector<8xf32>
    %60 = vector.shape_cast %59 : vector<8xf32> to vector<8x1xf32>
    %61 = vector.broadcast %60 : vector<8x1xf32> to vector<8x8xf32>
    %62 = arith.subf %58, %61 : vector<8x8xf32>
    %63 = math.exp %62 : vector<8x8xf32>
    %cst_22 = arith.constant dense<0.000000e+00> : vector<8xf32>
    %64 = vector.multi_reduction <add>, %63, %cst_22 [1] : vector<8x8xf32> to vector<8xf32>
    %65 = vector.shape_cast %64 : vector<8xf32> to vector<8x1xf32>
    %66 = tpu.reciprocal %65 {approx = true} : vector<8x1xf32> -> vector<8x1xf32>
    %67 = vector.broadcast %66 : vector<8x1xf32> to vector<8x8xf32>
    %68 = arith.mulf %63, %67 : vector<8x8xf32>
    %cst_23 = arith.constant dense<0.000000e+00> : vector<8x8xf32>
    %69 = tpu.matmul %68, %57, %cst_23 {dimension_numbers = #tpu.dot_dimension_numbers<[1], [0], [0], [1], [0, 0, 1, 1], [], []>} : vector<8x8xf32>, vector<8x8xf32>, vector<8x8xf32> -> vector<8x8xf32>
    %70 = vector.extract_strided_slice %22 {offsets = [0, 24], sizes = [8, 8], strides = [1, 1]} : vector<8x32xf32> to vector<8x8xf32>
    %71 = vector.extract_strided_slice %23 {offsets = [0, 24], sizes = [8, 8], strides = [1, 1]} : vector<8x32xf32> to vector<8x8xf32>
    %72 = vector.extract_strided_slice %24 {offsets = [0, 24], sizes = [8, 8], strides = [1, 1]} : vector<8x32xf32> to vector<8x8xf32>
    %cst_24 = arith.constant dense<0.000000e+00> : vector<8x8xf32>
    %73 = tpu.matmul %70, %71, %cst_24 {dimension_numbers = #tpu.dot_dimension_numbers<[1], [1], [0], [0], [0, 0, 1, 0], [], []>} : vector<8x8xf32>, vector<8x8xf32>, vector<8x8xf32> -> vector<8x8xf32>
    %cst_25 = arith.constant dense<0xFF800000> : vector<8xf32>
    %74 = vector.multi_reduction <maximumf>, %73, %cst_25 [1] : vector<8x8xf32> to vector<8xf32>
    %75 = vector.shape_cast %74 : vector<8xf32> to vector<8x1xf32>
    %76 = vector.broadcast %75 : vector<8x1xf32> to vector<8x8xf32>
    %77 = arith.subf %73, %76 : vector<8x8xf32>
    %78 = math.exp %77 : vector<8x8xf32>
    %cst_26 = arith.constant dense<0.000000e+00> : vector<8xf32>
    %79 = vector.multi_reduction <add>, %78, %cst_26 [1] : vector<8x8xf32> to vector<8xf32>
    %80 = vector.shape_cast %79 : vector<8xf32> to vector<8x1xf32>
    %81 = tpu.reciprocal %80 {approx = true} : vector<8x1xf32> -> vector<8x1xf32>
    %82 = vector.broadcast %81 : vector<8x1xf32> to vector<8x8xf32>
    %83 = arith.mulf %78, %82 : vector<8x8xf32>
    %cst_27 = arith.constant dense<0.000000e+00> : vector<8x8xf32>
    %84 = tpu.matmul %83, %72, %cst_27 {dimension_numbers = #tpu.dot_dimension_numbers<[1], [0], [0], [1], [0, 0, 1, 1], [], []>} : vector<8x8xf32>, vector<8x8xf32>, vector<8x8xf32> -> vector<8x8xf32>
    %85 = tpu.concatenate %39, %54, %69, %84 in 1 : vector<8x8xf32>, vector<8x8xf32>, vector<8x8xf32>, vector<8x8xf32> -> vector<8x32xf32>
    %86 = vector.extract_strided_slice %13 {offsets = [8, 0], sizes = [8, 32], strides = [1, 1]} : vector<16x32xf32> to vector<8x32xf32>
    %87 = vector.extract_strided_slice %17 {offsets = [8, 0], sizes = [8, 32], strides = [1, 1]} : vector<16x32xf32> to vector<8x32xf32>
    %88 = vector.extract_strided_slice %21 {offsets = [8, 0], sizes = [8, 32], strides = [1, 1]} : vector<16x32xf32> to vector<8x32xf32>
    %89 = vector.extract_strided_slice %86 {offsets = [0, 0], sizes = [8, 8], strides = [1, 1]} : vector<8x32xf32> to vector<8x8xf32>
    %90 = vector.extract_strided_slice %87 {offsets = [0, 0], sizes = [8, 8], strides = [1, 1]} : vector<8x32xf32> to vector<8x8xf32>
    %91 = vector.extract_strided_slice %88 {offsets = [0, 0], sizes = [8, 8], strides = [1, 1]} : vector<8x32xf32> to vector<8x8xf32>
    %cst_28 = arith.constant dense<0.000000e+00> : vector<8x8xf32>
    %92 = tpu.matmul %89, %90, %cst_28 {dimension_numbers = #tpu.dot_dimension_numbers<[1], [1], [0], [0], [0, 0, 1, 0], [], []>} : vector<8x8xf32>, vector<8x8xf32>, vector<8x8xf32> -> vector<8x8xf32>
    %cst_29 = arith.constant dense<0xFF800000> : vector<8xf32>
    %93 = vector.multi_reduction <maximumf>, %92, %cst_29 [1] : vector<8x8xf32> to vector<8xf32>
    %94 = vector.shape_cast %93 : vector<8xf32> to vector<8x1xf32>
    %95 = vector.broadcast %94 : vector<8x1xf32> to vector<8x8xf32>
    %96 = arith.subf %92, %95 : vector<8x8xf32>
    %97 = math.exp %96 : vector<8x8xf32>
    %cst_30 = arith.constant dense<0.000000e+00> : vector<8xf32>
    %98 = vector.multi_reduction <add>, %97, %cst_30 [1] : vector<8x8xf32> to vector<8xf32>
    %99 = vector.shape_cast %98 : vector<8xf32> to vector<8x1xf32>
    %100 = tpu.reciprocal %99 {approx = true} : vector<8x1xf32> -> vector<8x1xf32>
    %101 = vector.broadcast %100 : vector<8x1xf32> to vector<8x8xf32>
    %102 = arith.mulf %97, %101 : vector<8x8xf32>
    %cst_31 = arith.constant dense<0.000000e+00> : vector<8x8xf32>
    %103 = tpu.matmul %102, %91, %cst_31 {dimension_numbers = #tpu.dot_dimension_numbers<[1], [0], [0], [1], [0, 0, 1, 1], [], []>} : vector<8x8xf32>, vector<8x8xf32>, vector<8x8xf32> -> vector<8x8xf32>
    %104 = vector.extract_strided_slice %86 {offsets = [0, 8], sizes = [8, 8], strides = [1, 1]} : vector<8x32xf32> to vector<8x8xf32>
    %105 = vector.extract_strided_slice %87 {offsets = [0, 8], sizes = [8, 8], strides = [1, 1]} : vector<8x32xf32> to vector<8x8xf32>
    %106 = vector.extract_strided_slice %88 {offsets = [0, 8], sizes = [8, 8], strides = [1, 1]} : vector<8x32xf32> to vector<8x8xf32>
    %cst_32 = arith.constant dense<0.000000e+00> : vector<8x8xf32>
    %107 = tpu.matmul %104, %105, %cst_32 {dimension_numbers = #tpu.dot_dimension_numbers<[1], [1], [0], [0], [0, 0, 1, 0], [], []>} : vector<8x8xf32>, vector<8x8xf32>, vector<8x8xf32> -> vector<8x8xf32>
    %cst_33 = arith.constant dense<0xFF800000> : vector<8xf32>
    %108 = vector.multi_reduction <maximumf>, %107, %cst_33 [1] : vector<8x8xf32> to vector<8xf32>
    %109 = vector.shape_cast %108 : vector<8xf32> to vector<8x1xf32>
    %110 = vector.broadcast %109 : vector<8x1xf32> to vector<8x8xf32>
    %111 = arith.subf %107, %110 : vector<8x8xf32>
    %112 = math.exp %111 : vector<8x8xf32>
    %cst_34 = arith.constant dense<0.000000e+00> : vector<8xf32>
    %113 = vector.multi_reduction <add>, %112, %cst_34 [1] : vector<8x8xf32> to vector<8xf32>
    %114 = vector.shape_cast %113 : vector<8xf32> to vector<8x1xf32>
    %115 = tpu.reciprocal %114 {approx = true} : vector<8x1xf32> -> vector<8x1xf32>
    %116 = vector.broadcast %115 : vector<8x1xf32> to vector<8x8xf32>
    %117 = arith.mulf %112, %116 : vector<8x8xf32>
    %cst_35 = arith.constant dense<0.000000e+00> : vector<8x8xf32>
    %118 = tpu.matmul %117, %106, %cst_35 {dimension_numbers = #tpu.dot_dimension_numbers<[1], [0], [0], [1], [0, 0, 1, 1], [], []>} : vector<8x8xf32>, vector<8x8xf32>, vector<8x8xf32> -> vector<8x8xf32>
    %119 = vector.extract_strided_slice %86 {offsets = [0, 16], sizes = [8, 8], strides = [1, 1]} : vector<8x32xf32> to vector<8x8xf32>
    %120 = vector.extract_strided_slice %87 {offsets = [0, 16], sizes = [8, 8], strides = [1, 1]} : vector<8x32xf32> to vector<8x8xf32>
    %121 = vector.extract_strided_slice %88 {offsets = [0, 16], sizes = [8, 8], strides = [1, 1]} : vector<8x32xf32> to vector<8x8xf32>
    %cst_36 = arith.constant dense<0.000000e+00> : vector<8x8xf32>
    %122 = tpu.matmul %119, %120, %cst_36 {dimension_numbers = #tpu.dot_dimension_numbers<[1], [1], [0], [0], [0, 0, 1, 0], [], []>} : vector<8x8xf32>, vector<8x8xf32>, vector<8x8xf32> -> vector<8x8xf32>
    %cst_37 = arith.constant dense<0xFF800000> : vector<8xf32>
    %123 = vector.multi_reduction <maximumf>, %122, %cst_37 [1] : vector<8x8xf32> to vector<8xf32>
    %124 = vector.shape_cast %123 : vector<8xf32> to vector<8x1xf32>
    %125 = vector.broadcast %124 : vector<8x1xf32> to vector<8x8xf32>
    %126 = arith.subf %122, %125 : vector<8x8xf32>
    %127 = math.exp %126 : vector<8x8xf32>
    %cst_38 = arith.constant dense<0.000000e+00> : vector<8xf32>
    %128 = vector.multi_reduction <add>, %127, %cst_38 [1] : vector<8x8xf32> to vector<8xf32>
    %129 = vector.shape_cast %128 : vector<8xf32> to vector<8x1xf32>
    %130 = tpu.reciprocal %129 {approx = true} : vector<8x1xf32> -> vector<8x1xf32>
    %131 = vector.broadcast %130 : vector<8x1xf32> to vector<8x8xf32>
    %132 = arith.mulf %127, %131 : vector<8x8xf32>
    %cst_39 = arith.constant dense<0.000000e+00> : vector<8x8xf32>
    %133 = tpu.matmul %132, %121, %cst_39 {dimension_numbers = #tpu.dot_dimension_numbers<[1], [0], [0], [1], [0, 0, 1, 1], [], []>} : vector<8x8xf32>, vector<8x8xf32>, vector<8x8xf32> -> vector<8x8xf32>
    %134 = vector.extract_strided_slice %86 {offsets = [0, 24], sizes = [8, 8], strides = [1, 1]} : vector<8x32xf32> to vector<8x8xf32>
    %135 = vector.extract_strided_slice %87 {offsets = [0, 24], sizes = [8, 8], strides = [1, 1]} : vector<8x32xf32> to vector<8x8xf32>
    %136 = vector.extract_strided_slice %88 {offsets = [0, 24], sizes = [8, 8], strides = [1, 1]} : vector<8x32xf32> to vector<8x8xf32>
    %cst_40 = arith.constant dense<0.000000e+00> : vector<8x8xf32>
    %137 = tpu.matmul %134, %135, %cst_40 {dimension_numbers = #tpu.dot_dimension_numbers<[1], [1], [0], [0], [0, 0, 1, 0], [], []>} : vector<8x8xf32>, vector<8x8xf32>, vector<8x8xf32> -> vector<8x8xf32>
    %cst_41 = arith.constant dense<0xFF800000> : vector<8xf32>
    %138 = vector.multi_reduction <maximumf>, %137, %cst_41 [1] : vector<8x8xf32> to vector<8xf32>
    %139 = vector.shape_cast %138 : vector<8xf32> to vector<8x1xf32>
    %140 = vector.broadcast %139 : vector<8x1xf32> to vector<8x8xf32>
    %141 = arith.subf %137, %140 : vector<8x8xf32>
    %142 = math.exp %141 : vector<8x8xf32>
    %cst_42 = arith.constant dense<0.000000e+00> : vector<8xf32>
    %143 = vector.multi_reduction <add>, %142, %cst_42 [1] : vector<8x8xf32> to vector<8xf32>
    %144 = vector.shape_cast %143 : vector<8xf32> to vector<8x1xf32>
    %145 = tpu.reciprocal %144 {approx = true} : vector<8x1xf32> -> vector<8x1xf32>
    %146 = vector.broadcast %145 : vector<8x1xf32> to vector<8x8xf32>
    %147 = arith.mulf %142, %146 : vector<8x8xf32>
    %cst_43 = arith.constant dense<0.000000e+00> : vector<8x8xf32>
    %148 = tpu.matmul %147, %136, %cst_43 {dimension_numbers = #tpu.dot_dimension_numbers<[1], [0], [0], [1], [0, 0, 1, 1], [], []>} : vector<8x8xf32>, vector<8x8xf32>, vector<8x8xf32> -> vector<8x8xf32>
    %149 = tpu.concatenate %103, %118, %133, %148 in 1 : vector<8x8xf32>, vector<8x8xf32>, vector<8x8xf32>, vector<8x8xf32> -> vector<8x32xf32>
    %150 = tpu.concatenate %85, %149 in 0 : vector<8x32xf32>, vector<8x32xf32> -> vector<16x32xf32>
    %c0_44 = arith.constant 0 : index
    %c0_45 = arith.constant 0 : index
    %151 = vector.load %arg5[%c0_44, %c0_45] : memref<32x32xf32, #tpu.memory_space<vmem>>, vector<32x32xf32>
    %cst_46 = arith.constant dense<0.000000e+00> : vector<16x32xf32>
    %152 = tpu.matmul %150, %151, %cst_46 {dimension_numbers = #tpu.dot_dimension_numbers<[1], [0], [0], [1], [0, 0, 1, 1], [], []>} : vector<16x32xf32>, vector<32x32xf32>, vector<16x32xf32> -> vector<16x32xf32>
    %153 = vector.broadcast %5 : vector<1x32xf32> to vector<16x32xf32>
    %154 = arith.addf %152, %153 : vector<16x32xf32>
    %155 = arith.addf %154, %0 : vector<16x32xf32>
    %cst_47 = arith.constant dense<0.000000e+00> : vector<16xf32>
    %156 = vector.multi_reduction <add>, %155, %cst_47 [1] : vector<16x32xf32> to vector<16xf32>
    %157 = vector.shape_cast %156 : vector<16xf32> to vector<16x1xf32>
    %cst_48 = arith.constant 3.200000e+01 : f32
    %158 = vector.broadcast %cst_48 : f32 to vector<16x1xf32>
    %159 = arith.divf %157, %158 : vector<16x1xf32>
    %160 = vector.broadcast %159 : vector<16x1xf32> to vector<16x32xf32>
    %161 = arith.subf %155, %160 : vector<16x32xf32>
    %162 = arith.mulf %161, %161 : vector<16x32xf32>
    %cst_49 = arith.constant dense<0.000000e+00> : vector<16xf32>
    %163 = vector.multi_reduction <add>, %162, %cst_49 [1] : vector<16x32xf32> to vector<16xf32>
    %164 = vector.shape_cast %163 : vector<16xf32> to vector<16x1xf32>
    %cst_50 = arith.constant 3.200000e+01 : f32
    %165 = vector.broadcast %cst_50 : f32 to vector<16x1xf32>
    %166 = arith.divf %164, %165 : vector<16x1xf32>
    %167 = vector.broadcast %159 : vector<16x1xf32> to vector<16x32xf32>
    %168 = arith.subf %155, %167 : vector<16x32xf32>
    %cst_51 = arith.constant 9.99999996E-13 : f32
    %169 = vector.broadcast %cst_51 : f32 to vector<16x1xf32>
    %170 = arith.addf %166, %169 : vector<16x1xf32>
    %171 = math.rsqrt %170 : vector<16x1xf32>
    %172 = vector.broadcast %171 : vector<16x1xf32> to vector<16x32xf32>
    %173 = arith.mulf %168, %172 : vector<16x32xf32>
    %174 = vector.broadcast %6 : vector<1x32xf32> to vector<16x32xf32>
    %175 = arith.mulf %173, %174 : vector<16x32xf32>
    %176 = vector.broadcast %7 : vector<1x32xf32> to vector<16x32xf32>
    %177 = arith.addf %175, %176 : vector<16x32xf32>
    %c0_52 = arith.constant 0 : index
    %c0_53 = arith.constant 0 : index
    %178 = vector.load %arg7[%c0_52, %c0_53] : memref<16x32xf32, #tpu.memory_space<vmem>>, vector<16x32xf32>
    tpu.vector_store %arg7[%c0_52, %c0_53], %177 {strides = array<i32>} : memref<16x32xf32, #tpu.memory_space<vmem>>, vector<16x32xf32>,
    return
  }
  func.func @transform_0(%arg0: i32) -> (i32, i32) {
    %c0_i32 = arith.constant 0 : i32
    %c0_i32_0 = arith.constant 0 : i32
    return %arg0, %c0_i32 : i32, i32
  }
  func.func @transform_1(%arg0: i32) -> (i32, i32) {
    %c0_i32 = arith.constant 0 : i32
    %c0_i32_0 = arith.constant 0 : i32
    %c0_i32_1 = arith.constant 0 : i32
    return %c0_i32, %c0_i32_0 : i32, i32
  }
  func.func @transform_2(%arg0: i32) -> (i32, i32) {
    %c0_i32 = arith.constant 0 : i32
    %c0_i32_0 = arith.constant 0 : i32
    %c0_i32_1 = arith.constant 0 : i32
    return %c0_i32, %c0_i32_0 : i32, i32
  }
  func.func @transform_3(%arg0: i32) -> (i32, i32) {
    %c0_i32 = arith.constant 0 : i32
    %c0_i32_0 = arith.constant 0 : i32
    %c0_i32_1 = arith.constant 0 : i32
    return %c0_i32, %c0_i32_0 : i32, i32
  }
  func.func @transform_4(%arg0: i32) -> (i32, i32) {
    %c0_i32 = arith.constant 0 : i32
    %c0_i32_0 = arith.constant 0 : i32
    %c0_i32_1 = arith.constant 0 : i32
    return %c0_i32, %c0_i32_0 : i32, i32
  }
  func.func @transform_5(%arg0: i32) -> (i32, i32) {
    %c0_i32 = arith.constant 0 : i32
    %c0_i32_0 = arith.constant 0 : i32
    %c0_i32_1 = arith.constant 0 : i32
    return %c0_i32, %c0_i32_0 : i32, i32
  }
  func.func @transform_6(%arg0: i32) -> (i32, i32) {
    %c0_i32 = arith.constant 0 : i32
    %c0_i32_0 = arith.constant 0 : i32
    return %arg0, %c0_i32 : i32, i32
  }
}

</mosaic_0001>

<llo_original>
// kernel: tpu_custom_call.1
$region0: #{tpu_custom_call.1}
  #allocation0 [shape = 'u32[]', space=smem, size = 0x4, offset = 0x4, fixed_abs, tag = 'smem constant byte address 0x4 - core index']
  #allocation1 [shape = 'u32[144,128]{1,0:T(1,128)}', space=vmem, size = 0x12000, scoped, tag = 'internal scratch']
  %s0 = inlined_call_operand.hbm [shape: f32[16,32], index: 0, kind: input, shape index: {}]
  %s1 = inlined_call_operand.hbm [shape: f32[32,32], index: 1, kind: input, shape index: {}]
  %s2 = inlined_call_operand.hbm [shape: f32[32,32], index: 2, kind: input, shape index: {}]
  %s3 = inlined_call_operand.hbm [shape: f32[32,32], index: 3, kind: input, shape index: {}]
  %s4 = inlined_call_operand.hbm [shape: f32[32,32], index: 4, kind: input, shape index: {}]
  %s5 = inlined_call_operand.hbm [shape: f32[8,32], index: 5, kind: input, shape index: {}]
  %s6 = inlined_call_operand.hbm [shape: f32[16,32], index: 6, kind: output, shape index: {}]
  %s7 = sld [smem:[#allocation0]]
  $region58: #{tpu_custom_call.1} parent=0
    _
  %s9 = ssub.s32 1, %s7
  %s10 = scalar_select 0, %s9, %s7
  $region1: #{tpu_custom_call.1} parent=0
    #allocation2 [shape = 'u8[8192]{0}', space=vmem, size = 0x2000, scoped, tag = 'input window, operand 0, single buffered']
    #allocation3 [shape = 's32[1]{0}', space=sflag, size = 0x4, scoped, tag = 'scoped memory for tpu_custom_call.1']
    #allocation4 [shape = 's32[1]{0}', space=sflag, size = 0x4, scoped, tag = 'scoped memory for tpu_custom_call.1']
    #allocation5 [shape = 'u8[16384]{0}', space=vmem, size = 0x4000, scoped, tag = 'input window, operand 1, single buffered']
    #allocation6 [shape = 's32[1]{0}', space=sflag, size = 0x4, scoped, tag = 'scoped memory for tpu_custom_call.1']
    #allocation7 [shape = 'u8[16384]{0}', space=vmem, size = 0x4000, scoped, tag = 'input window, operand 2, single buffered']
    #allocation8 [shape = 'u8[16384]{0}', space=vmem, size = 0x4000, scoped, tag = 'input window, operand 3, single buffered']
    #allocation9 [shape = 's32[1]{0}', space=sflag, size = 0x4, scoped, tag = 'scoped memory for tpu_custom_call.1']
    #allocation10 [shape = 'u8[16384]{0}', space=vmem, size = 0x4000, scoped, tag = 'input window, operand 4, single buffered']
    #allocation11 [shape = 'u8[4096]{0}', space=vmem, size = 0x1000, scoped, tag = 'input window, operand 5, single buffered']
    #allocation12 [shape = 's32[1]{0}', space=sflag, size = 0x4, scoped, tag = 'scoped memory for tpu_custom_call.1']
    #allocation13 [shape = 'u8[8192]{0}', space=vmem, size = 0x2000, scoped, tag = 'output window, operand 0, single buffered']
    %11 = vsyncpa [#allocation3], 0
    %12 = vsyncpa [#allocation6], 0
    %13 = vsyncpa [#allocation9], 0
    %14 = vsyncpa [#allocation12], 0
    %15 = vsyncpa [#allocation4], 0
    // Predicated region
    $region2: #{tpu_custom_call.1} parent=1 // pred_check
      _
    $region3: #{tpu_custom_call.1} parent=1 // pred_check_branch
      %17 = sbr.rel (0) target = $region5
    $region4: #{tpu_custom_call.1} parent=1 // pred_region
      %s19 = ssub.s32 256, 256
      %20 = vsyncadd [#allocation3], %s19
      %s21 = sshll.u32 [#allocation2], 4
      %s22 = int_to_ptr.vmem [resolvable:$true] %s21
      %27 = dma.hbm_to_vmem [thread:$0]  %s0, 256, %s22, [#allocation3], 128, 128, 8
    $region5: #{tpu_custom_call.1} parent=1 // pred_fallthru
      _
    // Predicated region
    $region6: #{tpu_custom_call.1} parent=1 // pred_check
      _
    $region7: #{tpu_custom_call.1} parent=1 // pred_check_branch
      %29 = sbr.rel (0) target = $region9
    $region8: #{tpu_custom_call.1} parent=1 // pred_region
      %s31 = ssub.s32 512, 512
      %32 = vsyncadd [#allocation6], %s31
      %s33 = sshll.u32 [#allocation5], 4
      %s34 = int_to_ptr.vmem [resolvable:$true] %s33
      %39 = dma.hbm_to_vmem [thread:$0]  %s1, 512, %s34, [#allocation6], 128, 128, 8
    $region9: #{tpu_custom_call.1} parent=1 // pred_fallthru
      _
    // Predicated region
    $region10: #{tpu_custom_call.1} parent=1 // pred_check
      _
    $region11: #{tpu_custom_call.1} parent=1 // pred_check_branch
      %41 = sbr.rel (0) target = $region13
    $region12: #{tpu_custom_call.1} parent=1 // pred_region
      %s43 = ssub.s32 512, 512
      %44 = vsyncadd [#allocation6], %s43
      %s45 = sshll.u32 [#allocation7], 4
      %s46 = int_to_ptr.vmem [resolvable:$true] %s45
      %51 = dma.hbm_to_vmem [thread:$0]  %s2, 512, %s46, [#allocation6], 128, 128, 8
    $region13: #{tpu_custom_call.1} parent=1 // pred_fallthru
      _
    // Predicated region
    $region14: #{tpu_custom_call.1} parent=1 // pred_check
      _
    $region15: #{tpu_custom_call.1} parent=1 // pred_check_branch
      %53 = sbr.rel (0) target = $region17
    $region16: #{tpu_custom_call.1} parent=1 // pred_region
      %s55 = ssub.s32 512, 512
      %56 = vsyncadd [#allocation9], %s55
      %s57 = sshll.u32 [#allocation8], 4
      %s58 = int_to_ptr.vmem [resolvable:$true] %s57
      %63 = dma.hbm_to_vmem [thread:$0]  %s3, 512, %s58, [#allocation9], 128, 128, 8
    $region17: #{tpu_custom_call.1} parent=1 // pred_fallthru
      _
    // Predicated region
    $region18: #{tpu_custom_call.1} parent=1 // pred_check
      _
    $region19: #{tpu_custom_call.1} parent=1 // pred_check_branch
      %65 = sbr.rel (0) target = $region21
    $region20: #{tpu_custom_call.1} parent=1 // pred_region
      %s67 = ssub.s32 512, 512
      %68 = vsyncadd [#allocation9], %s67
      %s69 = sshll.u32 [#allocation10], 4
      %s70 = int_to_ptr.vmem [resolvable:$true] %s69
      %75 = dma.hbm_to_vmem [thread:$0]  %s4, 512, %s70, [#allocation9], 128, 128, 8
    $region21: #{tpu_custom_call.1} parent=1 // pred_fallthru
      _
    // Predicated region
    $region22: #{tpu_custom_call.1} parent=1 // pred_check
      _
    $region23: #{tpu_custom_call.1} parent=1 // pred_check_branch
      %77 = sbr.rel (0) target = $region25
    $region24: #{tpu_custom_call.1} parent=1 // pred_region
      %s79 = ssub.s32 128, 128
      %80 = vsyncadd [#allocation12], %s79
      %s82 = sshll.u32 [#allocation11], 4
      %s83 = int_to_ptr.vmem [resolvable:$true] %s82
      %85 = dma.hbm_to_vmem [thread:$0]  %s5, 128, %s83, [#allocation12]
    $region25: #{tpu_custom_call.1} parent=1 // pred_fallthru
      _
    // Predicated region
    $region26: #{tpu_custom_call.1} parent=1 // pred_check
      _
    $region27: #{tpu_custom_call.1} parent=1 // pred_check_branch
      %87 = sbr.rel (0) target = $region29
    $region28: #{tpu_custom_call.1} parent=1 // pred_region
      %88 = dma.done [#allocation3], 256
    $region29: #{tpu_custom_call.1} parent=1 // pred_fallthru
      _
    // Predicated region
    $region30: #{tpu_custom_call.1} parent=1 // pred_check
      _
    $region31: #{tpu_custom_call.1} parent=1 // pred_check_branch
      %90 = sbr.rel (0) target = $region33
    $region32: #{tpu_custom_call.1} parent=1 // pred_region
      %91 = dma.done [#allocation6], 512
    $region33: #{tpu_custom_call.1} parent=1 // pred_fallthru
      _
    // Predicated region
    $region34: #{tpu_custom_call.1} parent=1 // pred_check
      _
    $region35: #{tpu_custom_call.1} parent=1 // pred_check_branch
      %93 = sbr.rel (0) target = $region37
    $region36: #{tpu_custom_call.1} parent=1 // pred_region
      %94 = dma.done [#allocation6], 512
    $region37: #{tpu_custom_call.1} parent=1 // pred_fallthru
      _
    // Predicated region
    $region38: #{tpu_custom_call.1} parent=1 // pred_check
      _
    $region39: #{tpu_custom_call.1} parent=1 // pred_check_branch
      %96 = sbr.rel (0) target = $region41
    $region40: #{tpu_custom_call.1} parent=1 // pred_region
      %97 = dma.done [#allocation9], 512
    $region41: #{tpu_custom_call.1} parent=1 // pred_fallthru
      _
    // Predicated region
    $region42: #{tpu_custom_call.1} parent=1 // pred_check
      _
    $region43: #{tpu_custom_call.1} parent=1 // pred_check_branch
      %99 = sbr.rel (0) target = $region45
    $region44: #{tpu_custom_call.1} parent=1 // pred_region
      %100 = dma.done [#allocation9], 512
    $region45: #{tpu_custom_call.1} parent=1 // pred_fallthru
      _
    // Predicated region
    $region46: #{tpu_custom_call.1} parent=1 // pred_check
      _
    $region47: #{tpu_custom_call.1} parent=1 // pred_check_branch
      %102 = sbr.rel (0) target = $region49
    $region48: #{tpu_custom_call.1} parent=1 // pred_region
      %103 = dma.done [#allocation12], 128
    $region49: #{tpu_custom_call.1} parent=1 // pred_fallthru
      _
    %v104 = vld [vmem:[#allocation2] sm:$0xff]
    %v105 = vld [vmem:[#allocation2 + $0x8] sm:$0xff]
    %v106 = vld [vmem:[#allocation11] sm:$0xff]
    %v107 = vld [vmem:[#allocation5] sm:$0xff]
    %v108 = vld [vmem:[#allocation5 + $0x8] sm:$0xff]
    %v109 = vld [vmem:[#allocation5 + $0x10] sm:$0xff]
    %v110 = vld [vmem:[#allocation5 + $0x18] sm:$0xff]
    %v111 = vlaneseq
    %v112 = vshrl.u32 %v111, 7
    %v113 = vsub.s32 0, %v112
    %v114 = vrot.slane %v106, %v113
    %vm115 = vcmask 261120
    %v117 = vsel %vm115, %v104, 0
    %v120 = vsel %vm115, %v105, 0
    %122 = vmatprep.subr.mxu0 0.0
    %123 = vmatpush1.msra.mxu0 %v107
    %124 = vmatprep.subr.mxu0 0.0
    %125 = vmatpush1.msra.mxu0 %v108
    %126 = vmatprep.subr.mxu0 0.0
    %127 = vmatpush1.msra.mxu0 %v109
    %128 = vmatprep.subr.mxu0 0.0
    %129 = vmatpush1.msra.mxu0 %v110
    %130 = vmatprep.subr.mxu0 0.0
    %131 = vmatpush1.msra.mxu0 0.0
    %132 = vmatprep.subr.mxu0 0.0
    %133 = vmatpush1.msra.mxu0 0.0
    %134 = vmatprep.subr.mxu0 0.0
    %135 = vmatpush1.msra.mxu0 0.0
    %136 = vmatprep.subr.mxu0 0.0
    %137 = vmatpush1.msra.mxu0 0.0
    %138 = vmatprep.subr.mxu0 0.0
    %139 = vmatpush1.msra.mxu0 0.0
    %140 = vmatprep.subr.mxu0 0.0
    %141 = vmatpush1.msra.mxu0 0.0
    %142 = vmatprep.subr.mxu0 0.0
    %143 = vmatpush1.msra.mxu0 0.0
    %144 = vmatprep.subr.mxu0 0.0
    %145 = vmatpush1.msra.mxu0 0.0
    %146 = vmatprep.subr.mxu0 0.0
    %147 = vmatpush1.msra.mxu0 0.0
    %148 = vmatprep.subr.mxu0 0.0
    %149 = vmatpush1.msra.mxu0 0.0
    %150 = vmatprep.subr.mxu0 0.0
    %151 = vmatpush1.msra.mxu0 0.0
    %152 = vmatprep.subr.mxu0 0.0
    %153 = vmatpush1.msra.mxu0 0.0
    %154 = vmatprep.subr.mxu0 0.0
    %155 = vmatpush1.msra.mxu0 0.0
    %156 = vmatprep.subr.mxu0 0.0
    %157 = vmatpush1.msra.mxu0 0.0
    %158 = vmatprep.subr.mxu0 0.0
    %159 = vmatpush1.msra.mxu0 0.0
    %160 = vmatprep.subr.mxu0 0.0
    %161 = vmatpush1.msra.mxu0 0.0
    %162 = vmatprep.subr.mxu0 0.0
    %163 = vmatpush1.msra.mxu0 0.0
    %164 = vmatprep.subr.mxu0 0.0
    %165 = vmatpush1.msra.mxu0 0.0
    %166 = vmatprep.subr.mxu0 0.0
    %167 = vmatpush1.msra.mxu0 0.0
    %168 = vmatprep.subr.mxu0 0.0
    %169 = vmatpush1.msra.mxu0 0.0
    %170 = vmatprep.subr.mxu0 0.0
    %171 = vmatpush1.msra.mxu0 0.0
    %172 = vmatprep.subr.mxu0 0.0
    %173 = vmatpush1.msra.mxu0 0.0
    %174 = vmatprep.subr.mxu0 0.0
    %175 = vmatpush1.msra.mxu0 0.0
    %176 = vmatprep.subr.mxu0 0.0
    %177 = vmatpush1.msra.mxu0 0.0
    %178 = vmatprep.subr.mxu0 0.0
    %179 = vmatpush1.msra.mxu0 0.0
    %180 = vmatprep.subr.mxu0 0.0
    %181 = vmatpush1.msra.mxu0 0.0
    %182 = vmatprep.subr.mxu0 0.0
    %183 = vmatpush1.msra.mxu0 0.0
    %184 = vmatprep.subr.mxu0 0.0
    %185 = vmatpush1.msra.mxu0 0.0
    %186 = vmatprep.mubr.f32.mxu0 0.0
    %187 = vmatmul.mubr.f32.gmra.mrb[0].mxu0 %v117
    %v188 = vpop.f32.mrb[0].mxu0
    %v189 = vadd.f32 %v114, %v188
    %v190 = vpop.f32.mrb[0].mxu0
    %191 = vmatprep.mubr.f32.mxu0 0.0
    %192 = vmatmul.mubr.f32.gmra.mrb[0].mxu0 %v120
    %v193 = vpop.f32.mrb[0].mxu0
    %v194 = vadd.f32 %v114, %v193
    %v195 = vpop.f32.mrb[0].mxu0
    %196 = vdwg.mxu0
    %v197 = vmul.f32 %v189, 0.35355338
    %v198 = vmul.f32 %v194, 0.35355338
    %v199 = vld [vmem:[#allocation7] sm:$0xff]
    %v200 = vld [vmem:[#allocation7 + $0x8] sm:$0xff]
    %v201 = vld [vmem:[#allocation7 + $0x10] sm:$0xff]
    %v202 = vld [vmem:[#allocation7 + $0x18] sm:$0xff]
    %v203 = vlaneseq
    %v204 = vshrl.u32 %v203, 7
    %v205 = vsub.s32 1, %v204
    %v206 = vrot.slane %v106, %v205
    %207 = vmatprep.subr.mxu0 0.0
    %208 = vmatpush1.msra.mxu0 %v199
    %209 = vmatprep.subr.mxu0 0.0
    %210 = vmatpush1.msra.mxu0 %v200
    %211 = vmatprep.subr.mxu0 0.0
    %212 = vmatpush1.msra.mxu0 %v201
    %213 = vmatprep.subr.mxu0 0.0
    %214 = vmatpush1.msra.mxu0 %v202
    %215 = vmatprep.subr.mxu0 0.0
    %216 = vmatpush1.msra.mxu0 0.0
    %217 = vmatprep.subr.mxu0 0.0
    %218 = vmatpush1.msra.mxu0 0.0
    %219 = vmatprep.subr.mxu0 0.0
    %220 = vmatpush1.msra.mxu0 0.0
    %221 = vmatprep.subr.mxu0 0.0
    %222 = vmatpush1.msra.mxu0 0.0
    %223 = vmatprep.subr.mxu0 0.0
    %224 = vmatpush1.msra.mxu0 0.0
    %225 = vmatprep.subr.mxu0 0.0
    %226 = vmatpush1.msra.mxu0 0.0
    %227 = vmatprep.subr.mxu0 0.0
    %228 = vmatpush1.msra.mxu0 0.0
    %229 = vmatprep.subr.mxu0 0.0
    %230 = vmatpush1.msra.mxu0 0.0
    %231 = vmatprep.subr.mxu0 0.0
    %232 = vmatpush1.msra.mxu0 0.0
    %233 = vmatprep.subr.mxu0 0.0
    %234 = vmatpush1.msra.mxu0 0.0
    %235 = vmatprep.subr.mxu0 0.0
    %236 = vmatpush1.msra.mxu0 0.0
    %237 = vmatprep.subr.mxu0 0.0
    %238 = vmatpush1.msra.mxu0 0.0
    %239 = vmatprep.subr.mxu0 0.0
    %240 = vmatpush1.msra.mxu0 0.0
    %241 = vmatprep.subr.mxu0 0.0
    %242 = vmatpush1.msra.mxu0 0.0
    %243 = vmatprep.subr.mxu0 0.0
    %244 = vmatpush1.msra.mxu0 0.0
    %245 = vmatprep.subr.mxu0 0.0
    %246 = vmatpush1.msra.mxu0 0.0
    %247 = vmatprep.subr.mxu0 0.0
    %248 = vmatpush1.msra.mxu0 0.0
    %249 = vmatprep.subr.mxu0 0.0
    %250 = vmatpush1.msra.mxu0 0.0
    %251 = vmatprep.subr.mxu0 0.0
    %252 = vmatpush1.msra.mxu0 0.0
    %253 = vmatprep.subr.mxu0 0.0
    %254 = vmatpush1.msra.mxu0 0.0
    %255 = vmatprep.subr.mxu0 0.0
    %256 = vmatpush1.msra.mxu0 0.0
    %257 = vmatprep.subr.mxu0 0.0
    %258 = vmatpush1.msra.mxu0 0.0
    %259 = vmatprep.subr.mxu0 0.0
    %260 = vmatpush1.msra.mxu0 0.0
    %261 = vmatprep.subr.mxu0 0.0
    %262 = vmatpush1.msra.mxu0 0.0
    %263 = vmatprep.subr.mxu0 0.0
    %264 = vmatpush1.msra.mxu0 0.0
    %265 = vmatprep.subr.mxu0 0.0
    %266 = vmatpush1.msra.mxu0 0.0
    %267 = vmatprep.subr.mxu0 0.0
    %268 = vmatpush1.msra.mxu0 0.0
    %269 = vmatprep.subr.mxu0 0.0
    %270 = vmatpush1.msra.mxu0 0.0
    %271 = vmatprep.mubr.f32.mxu0 0.0
    %272 = vmatmul.mubr.f32.gmra.mrb[0].mxu0 %v117
    %v273 = vpop.f32.mrb[0].mxu0
    %v274 = vadd.f32 %v206, %v273
    %v275 = vpop.f32.mrb[0].mxu0
    %276 = vmatprep.mubr.f32.mxu0 0.0
    %277 = vmatmul.mubr.f32.gmra.mrb[0].mxu0 %v120
    %v278 = vpop.f32.mrb[0].mxu0
    %v279 = vadd.f32 %v206, %v278
    %v280 = vpop.f32.mrb[0].mxu0
    %281 = vdwg.mxu0
    %v282 = vld [vmem:[#allocation8] sm:$0xff]
    %v283 = vld [vmem:[#allocation8 + $0x8] sm:$0xff]
    %v284 = vld [vmem:[#allocation8 + $0x10] sm:$0xff]
    %v285 = vld [vmem:[#allocation8 + $0x18] sm:$0xff]
    %v286 = vlaneseq
    %v287 = vshrl.u32 %v286, 7
    %v288 = vsub.s32 2, %v287
    %v289 = vrot.slane %v106, %v288
    %290 = vmatprep.subr.mxu0 0.0
    %291 = vmatpush1.msra.mxu0 %v282
    %292 = vmatprep.subr.mxu0 0.0
    %293 = vmatpush1.msra.mxu0 %v283
    %294 = vmatprep.subr.mxu0 0.0
    %295 = vmatpush1.msra.mxu0 %v284
    %296 = vmatprep.subr.mxu0 0.0
    %297 = vmatpush1.msra.mxu0 %v285
    %298 = vmatprep.subr.mxu0 0.0
    %299 = vmatpush1.msra.mxu0 0.0
    %300 = vmatprep.subr.mxu0 0.0
    %301 = vmatpush1.msra.mxu0 0.0
    %302 = vmatprep.subr.mxu0 0.0
    %303 = vmatpush1.msra.mxu0 0.0
    %304 = vmatprep.subr.mxu0 0.0
    %305 = vmatpush1.msra.mxu0 0.0
    %306 = vmatprep.subr.mxu0 0.0
    %307 = vmatpush1.msra.mxu0 0.0
    %308 = vmatprep.subr.mxu0 0.0
    %309 = vmatpush1.msra.mxu0 0.0
    %310 = vmatprep.subr.mxu0 0.0
    %311 = vmatpush1.msra.mxu0 0.0
    %312 = vmatprep.subr.mxu0 0.0
    %313 = vmatpush1.msra.mxu0 0.0
    %314 = vmatprep.subr.mxu0 0.0
    %315 = vmatpush1.msra.mxu0 0.0
    %316 = vmatprep.subr.mxu0 0.0
    %317 = vmatpush1.msra.mxu0 0.0
    %318 = vmatprep.subr.mxu0 0.0
    %319 = vmatpush1.msra.mxu0 0.0
    %320 = vmatprep.subr.mxu0 0.0
    %321 = vmatpush1.msra.mxu0 0.0
    %322 = vmatprep.subr.mxu0 0.0
    %323 = vmatpush1.msra.mxu0 0.0
    %324 = vmatprep.subr.mxu0 0.0
    %325 = vmatpush1.msra.mxu0 0.0
    %326 = vmatprep.subr.mxu0 0.0
    %327 = vmatpush1.msra.mxu0 0.0
    %328 = vmatprep.subr.mxu0 0.0
    %329 = vmatpush1.msra.mxu0 0.0
    %330 = vmatprep.subr.mxu0 0.0
    %331 = vmatpush1.msra.mxu0 0.0
    %332 = vmatprep.subr.mxu0 0.0
    %333 = vmatpush1.msra.mxu0 0.0
    %334 = vmatprep.subr.mxu0 0.0
    %335 = vmatpush1.msra.mxu0 0.0
    %336 = vmatprep.subr.mxu0 0.0
    %337 = vmatpush1.msra.mxu0 0.0
    %338 = vmatprep.subr.mxu0 0.0
    %339 = vmatpush1.msra.mxu0 0.0
    %340 = vmatprep.subr.mxu0 0.0
    %341 = vmatpush1.msra.mxu0 0.0
    %342 = vmatprep.subr.mxu0 0.0
    %343 = vmatpush1.msra.mxu0 0.0
    %344 = vmatprep.subr.mxu0 0.0
    %345 = vmatpush1.msra.mxu0 0.0
    %346 = vmatprep.subr.mxu0 0.0
    %347 = vmatpush1.msra.mxu0 0.0
    %348 = vmatprep.subr.mxu0 0.0
    %349 = vmatpush1.msra.mxu0 0.0
    %350 = vmatprep.subr.mxu0 0.0
    %351 = vmatpush1.msra.mxu0 0.0
    %352 = vmatprep.subr.mxu0 0.0
    %353 = vmatpush1.msra.mxu0 0.0
    %354 = vmatprep.mubr.f32.mxu0 0.0
    %355 = vmatmul.mubr.f32.gmra.mrb[0].mxu0 %v117
    %v356 = vpop.f32.mrb[0].mxu0
    %v357 = vadd.f32 %v289, %v356
    %v358 = vpop.f32.mrb[0].mxu0
    %359 = vmatprep.mubr.f32.mxu0 0.0
    %360 = vmatmul.mubr.f32.gmra.mrb[0].mxu0 %v120
    %v361 = vpop.f32.mrb[0].mxu0
    %v362 = vadd.f32 %v289, %v361
    %v363 = vpop.f32.mrb[0].mxu0
    %364 = vdwg.mxu0
    %vm365 = vcmask 64512
    %v367 = vsel %vm365, %v197, 0
    %v370 = vsel %vm365, %v274, 0
    %372 = vmatprep.subr.mxu0 0.0
    %373 = vmatpush1.xpose.msra.mxu0 %v370
    %374 = vmatprep.subr.mxu0 0.0
    %375 = vmatpush1.xpose.msra.mxu0 0.0
    %376 = vmatprep.subr.mxu0 0.0
    %377 = vmatpush1.xpose.msra.mxu0 0.0
    %378 = vmatprep.subr.mxu0 0.0
    %379 = vmatpush1.xpose.msra.mxu0 0.0
    %380 = vmatprep.subr.mxu0 0.0
    %381 = vmatpush1.xpose.msra.mxu0 0.0
    %382 = vmatprep.subr.mxu0 0.0
    %383 = vmatpush1.xpose.msra.mxu0 0.0
    %384 = vmatprep.subr.mxu0 0.0
    %385 = vmatpush1.xpose.msra.mxu0 0.0
    %386 = vmatprep.subr.mxu0 0.0
    %387 = vmatpush1.xpose.msra.mxu0 0.0
    %388 = vmatprep.subr.mxu0 0.0
    %389 = vmatpush1.xpose.msra.mxu0 0.0
    %390 = vmatprep.subr.mxu0 0.0
    %391 = vmatpush1.xpose.msra.mxu0 0.0
    %392 = vmatprep.subr.mxu0 0.0
    %393 = vmatpush1.xpose.msra.mxu0 0.0
    %394 = vmatprep.subr.mxu0 0.0
    %395 = vmatpush1.xpose.msra.mxu0 0.0
    %396 = vmatprep.subr.mxu0 0.0
    %397 = vmatpush1.xpose.msra.mxu0 0.0
    %398 = vmatprep.subr.mxu0 0.0
    %399 = vmatpush1.xpose.msra.mxu0 0.0
    %400 = vmatprep.subr.mxu0 0.0
    %401 = vmatpush1.xpose.msra.mxu0 0.0
    %402 = vmatprep.subr.mxu0 0.0
    %403 = vmatpush1.xpose.msra.mxu0 0.0
    %404 = vmatprep.subr.mxu0 0.0
    %405 = vmatpush1.xpose.msra.mxu0 0.0
    %406 = vmatprep.subr.mxu0 0.0
    %407 = vmatpush1.xpose.msra.mxu0 0.0
    %408 = vmatprep.subr.mxu0 0.0
    %409 = vmatpush1.xpose.msra.mxu0 0.0
    %410 = vmatprep.subr.mxu0 0.0
    %411 = vmatpush1.xpose.msra.mxu0 0.0
    %412 = vmatprep.subr.mxu0 0.0
    %413 = vmatpush1.xpose.msra.mxu0 0.0
    %414 = vmatprep.subr.mxu0 0.0
    %415 = vmatpush1.xpose.msra.mxu0 0.0
    %416 = vmatprep.subr.mxu0 0.0
    %417 = vmatpush1.xpose.msra.mxu0 0.0
    %418 = vmatprep.subr.mxu0 0.0
    %419 = vmatpush1.xpose.msra.mxu0 0.0
    %420 = vmatprep.subr.mxu0 0.0
    %421 = vmatpush1.xpose.msra.mxu0 0.0
    %422 = vmatprep.subr.mxu0 0.0
    %423 = vmatpush1.xpose.msra.mxu0 0.0
    %424 = vmatprep.subr.mxu0 0.0
    %425 = vmatpush1.xpose.msra.mxu0 0.0
    %426 = vmatprep.subr.mxu0 0.0
    %427 = vmatpush1.xpose.msra.mxu0 0.0
    %428 = vmatprep.subr.mxu0 0.0
    %429 = vmatpush1.xpose.msra.mxu0 0.0
    %430 = vmatprep.subr.mxu0 0.0
    %431 = vmatpush1.xpose.msra.mxu0 0.0
    %432 = vmatprep.subr.mxu0 0.0
    %433 = vmatpush1.xpose.msra.mxu0 0.0
    %434 = vmatprep.subr.mxu0 0.0
    %435 = vmatpush1.xpose.msra.mxu0 0.0
    %436 = vmatprep.mubr.f32.mxu0 0.0
    %437 = vmatmul.mubr.f32.gmra.mrb[0].mxu0 %v367
    %v438 = vpop.f32.mrb[0].mxu0
    %v439 = vadd.f32 0.0, %v438
    %v440 = vpop.f32.mrb[0].mxu0
    %441 = vdwg.mxu0
    %v442 = vsel %vm365, %v439, -inf
    %443 = vmax.xlane.f32.xlu0 %v442
    %v444 = vpop.xlane.xlu0 %443
    %v445 = vsub.f32 %v439, %v444
    %v446 = vmul.f32 %v445, 1.442695
    %v447 = vpow.pop %v446
    %v448 = vsel %vm365, %v447, 0.0
    %449 = vadd.xlane.f32.xlu0 %v448
    %v450 = vpop.xlane.xlu0 %449
    %v451 = vrcp.pop %v450
    %v452 = vmul.f32 %v447, %v451
    %v454 = vsel %vm365, %v452, 0
    %456 = vmatprep.subr.mxu0 0.0
    %457 = vmatpush1.msra.mxu0 %v357
    %458 = vmatprep.subr.mxu0 0.0
    %459 = vmatpush1.msra.mxu0 0.0
    %460 = vmatprep.subr.mxu0 0.0
    %461 = vmatpush1.msra.mxu0 0.0
    %462 = vmatprep.subr.mxu0 0.0
    %463 = vmatpush1.msra.mxu0 0.0
    %464 = vmatprep.subr.mxu0 0.0
    %465 = vmatpush1.msra.mxu0 0.0
    %466 = vmatprep.subr.mxu0 0.0
    %467 = vmatpush1.msra.mxu0 0.0
    %468 = vmatprep.subr.mxu0 0.0
    %469 = vmatpush1.msra.mxu0 0.0
    %470 = vmatprep.subr.mxu0 0.0
    %471 = vmatpush1.msra.mxu0 0.0
    %472 = vmatprep.subr.mxu0 0.0
    %473 = vmatpush1.msra.mxu0 0.0
    %474 = vmatprep.subr.mxu0 0.0
    %475 = vmatpush1.msra.mxu0 0.0
    %476 = vmatprep.subr.mxu0 0.0
    %477 = vmatpush1.msra.mxu0 0.0
    %478 = vmatprep.subr.mxu0 0.0
    %479 = vmatpush1.msra.mxu0 0.0
    %480 = vmatprep.subr.mxu0 0.0
    %481 = vmatpush1.msra.mxu0 0.0
    %482 = vmatprep.subr.mxu0 0.0
    %483 = vmatpush1.msra.mxu0 0.0
    %484 = vmatprep.subr.mxu0 0.0
    %485 = vmatpush1.msra.mxu0 0.0
    %486 = vmatprep.subr.mxu0 0.0
    %487 = vmatpush1.msra.mxu0 0.0
    %488 = vmatprep.subr.mxu0 0.0
    %489 = vmatpush1.msra.mxu0 0.0
    %490 = vmatprep.subr.mxu0 0.0
    %491 = vmatpush1.msra.mxu0 0.0
    %492 = vmatprep.subr.mxu0 0.0
    %493 = vmatpush1.msra.mxu0 0.0
    %494 = vmatprep.subr.mxu0 0.0
    %495 = vmatpush1.msra.mxu0 0.0
    %496 = vmatprep.subr.mxu0 0.0
    %497 = vmatpush1.msra.mxu0 0.0
    %498 = vmatprep.subr.mxu0 0.0
    %499 = vmatpush1.msra.mxu0 0.0
    %500 = vmatprep.subr.mxu0 0.0
    %501 = vmatpush1.msra.mxu0 0.0
    %502 = vmatprep.subr.mxu0 0.0
    %503 = vmatpush1.msra.mxu0 0.0
    %504 = vmatprep.subr.mxu0 0.0
    %505 = vmatpush1.msra.mxu0 0.0
    %506 = vmatprep.subr.mxu0 0.0
    %507 = vmatpush1.msra.mxu0 0.0
    %508 = vmatprep.subr.mxu0 0.0
    %509 = vmatpush1.msra.mxu0 0.0
    %510 = vmatprep.subr.mxu0 0.0
    %511 = vmatpush1.msra.mxu0 0.0
    %512 = vmatprep.subr.mxu0 0.0
    %513 = vmatpush1.msra.mxu0 0.0
    %514 = vmatprep.subr.mxu0 0.0
    %515 = vmatpush1.msra.mxu0 0.0
    %516 = vmatprep.subr.mxu0 0.0
    %517 = vmatpush1.msra.mxu0 0.0
    %518 = vmatprep.subr.mxu0 0.0
    %519 = vmatpush1.msra.mxu0 0.0
    %520 = vmatprep.mubr.f32.mxu0 0.0
    %521 = vmatmul.mubr.f32.gmra.mrb[0].mxu0 %v454
    %v522 = vpop.f32.mrb[0].mxu0
    %v523 = vadd.f32 0.0, %v522
    %v524 = vpop.f32.mrb[0].mxu0
    %525 = vdwg.mxu0
    %526 = vrot.lane.b32.xlu0 %v197, 120
    %v527 = vpop.permute.xlu0 %526
    %528 = vrot.lane.b32.xlu0 %v274, 120
    %v529 = vpop.permute.xlu0 %528
    %v530 = vsel %vm365, %v527, 0
    %v532 = vsel %vm365, %v529, 0
    %534 = vmatprep.subr.mxu0 0.0
    %535 = vmatpush1.xpose.msra.mxu0 %v532
    %536 = vmatprep.subr.mxu0 0.0
    %537 = vmatpush1.xpose.msra.mxu0 0.0
    %538 = vmatprep.subr.mxu0 0.0
    %539 = vmatpush1.xpose.msra.mxu0 0.0
    %540 = vmatprep.subr.mxu0 0.0
    %541 = vmatpush1.xpose.msra.mxu0 0.0
    %542 = vmatprep.subr.mxu0 0.0
    %543 = vmatpush1.xpose.msra.mxu0 0.0
    %544 = vmatprep.subr.mxu0 0.0
    %545 = vmatpush1.xpose.msra.mxu0 0.0
    %546 = vmatprep.subr.mxu0 0.0
    %547 = vmatpush1.xpose.msra.mxu0 0.0
    %548 = vmatprep.subr.mxu0 0.0
    %549 = vmatpush1.xpose.msra.mxu0 0.0
    %550 = vmatprep.subr.mxu0 0.0
    %551 = vmatpush1.xpose.msra.mxu0 0.0
    %552 = vmatprep.subr.mxu0 0.0
    %553 = vmatpush1.xpose.msra.mxu0 0.0
    %554 = vmatprep.subr.mxu0 0.0
    %555 = vmatpush1.xpose.msra.mxu0 0.0
    %556 = vmatprep.subr.mxu0 0.0
    %557 = vmatpush1.xpose.msra.mxu0 0.0
    %558 = vmatprep.subr.mxu0 0.0
    %559 = vmatpush1.xpose.msra.mxu0 0.0
    %560 = vmatprep.subr.mxu0 0.0
    %561 = vmatpush1.xpose.msra.mxu0 0.0
    %562 = vmatprep.subr.mxu0 0.0
    %563 = vmatpush1.xpose.msra.mxu0 0.0
    %564 = vmatprep.subr.mxu0 0.0
    %565 = vmatpush1.xpose.msra.mxu0 0.0
    %566 = vmatprep.subr.mxu0 0.0
    %567 = vmatpush1.xpose.msra.mxu0 0.0
    %568 = vmatprep.subr.mxu0 0.0
    %569 = vmatpush1.xpose.msra.mxu0 0.0
    %570 = vmatprep.subr.mxu0 0.0
    %571 = vmatpush1.xpose.msra.mxu0 0.0
    %572 = vmatprep.subr.mxu0 0.0
    %573 = vmatpush1.xpose.msra.mxu0 0.0
    %574 = vmatprep.subr.mxu0 0.0
    %575 = vmatpush1.xpose.msra.mxu0 0.0
    %576 = vmatprep.subr.mxu0 0.0
    %577 = vmatpush1.xpose.msra.mxu0 0.0
    %578 = vmatprep.subr.mxu0 0.0
    %579 = vmatpush1.xpose.msra.mxu0 0.0
    %580 = vmatprep.subr.mxu0 0.0
    %581 = vmatpush1.xpose.msra.mxu0 0.0
    %582 = vmatprep.subr.mxu0 0.0
    %583 = vmatpush1.xpose.msra.mxu0 0.0
    %584 = vmatprep.subr.mxu0 0.0
    %585 = vmatpush1.xpose.msra.mxu0 0.0
    %586 = vmatprep.subr.mxu0 0.0
    %587 = vmatpush1.xpose.msra.mxu0 0.0
    %588 = vmatprep.subr.mxu0 0.0
    %589 = vmatpush1.xpose.msra.mxu0 0.0
    %590 = vmatprep.subr.mxu0 0.0
    %591 = vmatpush1.xpose.msra.mxu0 0.0
    %592 = vmatprep.subr.mxu0 0.0
    %593 = vmatpush1.xpose.msra.mxu0 0.0
    %594 = vmatprep.subr.mxu0 0.0
    %595 = vmatpush1.xpose.msra.mxu0 0.0
    %596 = vmatprep.subr.mxu0 0.0
    %597 = vmatpush1.xpose.msra.mxu0 0.0
    %598 = vmatprep.mubr.f32.mxu0 0.0
    %599 = vmatmul.mubr.f32.gmra.mrb[0].mxu0 %v530
    %v600 = vpop.f32.mrb[0].mxu0
    %v601 = vadd.f32 0.0, %v600
    %v602 = vpop.f32.mrb[0].mxu0
    %603 = vdwg.mxu0
    %v604 = vsel %vm365, %v601, -inf
    %605 = vmax.xlane.f32.xlu0 %v604
    %v606 = vpop.xlane.xlu0 %605
    %v607 = vsub.f32 %v601, %v606
    %v608 = vmul.f32 %v607, 1.442695
    %v609 = vpow.pop %v608
    %v610 = vsel %vm365, %v609, 0.0
    %611 = vadd.xlane.f32.xlu0 %v610
    %v612 = vpop.xlane.xlu0 %611
    %v613 = vrcp.pop %v612
    %v614 = vmul.f32 %v609, %v613
    %616 = vrot.lane.b32.xlu0 %v357, 120
    %v617 = vpop.permute.xlu0 %616
    %v620 = vsel %vm365, %v614, 0
    %622 = vmatprep.subr.mxu0 0.0
    %623 = vmatpush1.msra.mxu0 %v617
    %624 = vmatprep.subr.mxu0 0.0
    %625 = vmatpush1.msra.mxu0 0.0
    %626 = vmatprep.subr.mxu0 0.0
    %627 = vmatpush1.msra.mxu0 0.0
    %628 = vmatprep.subr.mxu0 0.0
    %629 = vmatpush1.msra.mxu0 0.0
    %630 = vmatprep.subr.mxu0 0.0
    %631 = vmatpush1.msra.mxu0 0.0
    %632 = vmatprep.subr.mxu0 0.0
    %633 = vmatpush1.msra.mxu0 0.0
    %634 = vmatprep.subr.mxu0 0.0
    %635 = vmatpush1.msra.mxu0 0.0
    %636 = vmatprep.subr.mxu0 0.0
    %637 = vmatpush1.msra.mxu0 0.0
    %638 = vmatprep.subr.mxu0 0.0
    %639 = vmatpush1.msra.mxu0 0.0
    %640 = vmatprep.subr.mxu0 0.0
    %641 = vmatpush1.msra.mxu0 0.0
    %642 = vmatprep.subr.mxu0 0.0
    %643 = vmatpush1.msra.mxu0 0.0
    %644 = vmatprep.subr.mxu0 0.0
    %645 = vmatpush1.msra.mxu0 0.0
    %646 = vmatprep.subr.mxu0 0.0
    %647 = vmatpush1.msra.mxu0 0.0
    %648 = vmatprep.subr.mxu0 0.0
    %649 = vmatpush1.msra.mxu0 0.0
    %650 = vmatprep.subr.mxu0 0.0
    %651 = vmatpush1.msra.mxu0 0.0
    %652 = vmatprep.subr.mxu0 0.0
    %653 = vmatpush1.msra.mxu0 0.0
    %654 = vmatprep.subr.mxu0 0.0
    %655 = vmatpush1.msra.mxu0 0.0
    %656 = vmatprep.subr.mxu0 0.0
    %657 = vmatpush1.msra.mxu0 0.0
    %658 = vmatprep.subr.mxu0 0.0
    %659 = vmatpush1.msra.mxu0 0.0
    %660 = vmatprep.subr.mxu0 0.0
    %661 = vmatpush1.msra.mxu0 0.0
    %662 = vmatprep.subr.mxu0 0.0
    %663 = vmatpush1.msra.mxu0 0.0
    %664 = vmatprep.subr.mxu0 0.0
    %665 = vmatpush1.msra.mxu0 0.0
    %666 = vmatprep.subr.mxu0 0.0
    %667 = vmatpush1.msra.mxu0 0.0
    %668 = vmatprep.subr.mxu0 0.0
    %669 = vmatpush1.msra.mxu0 0.0
    %670 = vmatprep.subr.mxu0 0.0
    %671 = vmatpush1.msra.mxu0 0.0
    %672 = vmatprep.subr.mxu0 0.0
    %673 = vmatpush1.msra.mxu0 0.0
    %674 = vmatprep.subr.mxu0 0.0
    %675 = vmatpush1.msra.mxu0 0.0
    %676 = vmatprep.subr.mxu0 0.0
    %677 = vmatpush1.msra.mxu0 0.0
    %678 = vmatprep.subr.mxu0 0.0
    %679 = vmatpush1.msra.mxu0 0.0
    %680 = vmatprep.subr.mxu0 0.0
    %681 = vmatpush1.msra.mxu0 0.0
    %682 = vmatprep.subr.mxu0 0.0
    %683 = vmatpush1.msra.mxu0 0.0
    %684 = vmatprep.subr.mxu0 0.0
    %685 = vmatpush1.msra.mxu0 0.0
    %686 = vmatprep.mubr.f32.mxu0 0.0
    %687 = vmatmul.mubr.f32.gmra.mrb[0].mxu0 %v620
    %v688 = vpop.f32.mrb[0].mxu0
    %v689 = vadd.f32 0.0, %v688
    %v690 = vpop.f32.mrb[0].mxu0
    %691 = vdwg.mxu0
    %692 = vrot.lane.b32.xlu0 %v197, 112
    %v693 = vpop.permute.xlu0 %692
    %694 = vrot.lane.b32.xlu0 %v274, 112
    %v695 = vpop.permute.xlu0 %694
    %v696 = vsel %vm365, %v693, 0
    %v698 = vsel %vm365, %v695, 0
    %700 = vmatprep.subr.mxu0 0.0
    %701 = vmatpush1.xpose.msra.mxu0 %v698
    %702 = vmatprep.subr.mxu0 0.0
    %703 = vmatpush1.xpose.msra.mxu0 0.0
    %704 = vmatprep.subr.mxu0 0.0
    %705 = vmatpush1.xpose.msra.mxu0 0.0
    %706 = vmatprep.subr.mxu0 0.0
    %707 = vmatpush1.xpose.msra.mxu0 0.0
    %708 = vmatprep.subr.mxu0 0.0
    %709 = vmatpush1.xpose.msra.mxu0 0.0
    %710 = vmatprep.subr.mxu0 0.0
    %711 = vmatpush1.xpose.msra.mxu0 0.0
    %712 = vmatprep.subr.mxu0 0.0
    %713 = vmatpush1.xpose.msra.mxu0 0.0
    %714 = vmatprep.subr.mxu0 0.0
    %715 = vmatpush1.xpose.msra.mxu0 0.0
    %716 = vmatprep.subr.mxu0 0.0
    %717 = vmatpush1.xpose.msra.mxu0 0.0
    %718 = vmatprep.subr.mxu0 0.0
    %719 = vmatpush1.xpose.msra.mxu0 0.0
    %720 = vmatprep.subr.mxu0 0.0
    %721 = vmatpush1.xpose.msra.mxu0 0.0
    %722 = vmatprep.subr.mxu0 0.0
    %723 = vmatpush1.xpose.msra.mxu0 0.0
    %724 = vmatprep.subr.mxu0 0.0
    %725 = vmatpush1.xpose.msra.mxu0 0.0
    %726 = vmatprep.subr.mxu0 0.0
    %727 = vmatpush1.xpose.msra.mxu0 0.0
    %728 = vmatprep.subr.mxu0 0.0
    %729 = vmatpush1.xpose.msra.mxu0 0.0
    %730 = vmatprep.subr.mxu0 0.0
    %731 = vmatpush1.xpose.msra.mxu0 0.0
    %732 = vmatprep.subr.mxu0 0.0
    %733 = vmatpush1.xpose.msra.mxu0 0.0
    %734 = vmatprep.subr.mxu0 0.0
    %735 = vmatpush1.xpose.msra.mxu0 0.0
    %736 = vmatprep.subr.mxu0 0.0
    %737 = vmatpush1.xpose.msra.mxu0 0.0
    %738 = vmatprep.subr.mxu0 0.0
    %739 = vmatpush1.xpose.msra.mxu0 0.0
    %740 = vmatprep.subr.mxu0 0.0
    %741 = vmatpush1.xpose.msra.mxu0 0.0
    %742 = vmatprep.subr.mxu0 0.0
    %743 = vmatpush1.xpose.msra.mxu0 0.0
    %744 = vmatprep.subr.mxu0 0.0
    %745 = vmatpush1.xpose.msra.mxu0 0.0
    %746 = vmatprep.subr.mxu0 0.0
    %747 = vmatpush1.xpose.msra.mxu0 0.0
    %748 = vmatprep.subr.mxu0 0.0
    %749 = vmatpush1.xpose.msra.mxu0 0.0
    %750 = vmatprep.subr.mxu0 0.0
    %751 = vmatpush1.xpose.msra.mxu0 0.0
    %752 = vmatprep.subr.mxu0 0.0
    %753 = vmatpush1.xpose.msra.mxu0 0.0
    %754 = vmatprep.subr.mxu0 0.0
    %755 = vmatpush1.xpose.msra.mxu0 0.0
    %756 = vmatprep.subr.mxu0 0.0
    %757 = vmatpush1.xpose.msra.mxu0 0.0
    %758 = vmatprep.subr.mxu0 0.0
    %759 = vmatpush1.xpose.msra.mxu0 0.0
    %760 = vmatprep.subr.mxu0 0.0
    %761 = vmatpush1.xpose.msra.mxu0 0.0
    %762 = vmatprep.subr.mxu0 0.0
    %763 = vmatpush1.xpose.msra.mxu0 0.0
    %764 = vmatprep.mubr.f32.mxu0 0.0
    %765 = vmatmul.mubr.f32.gmra.mrb[0].mxu0 %v696
    %v766 = vpop.f32.mrb[0].mxu0
    %v767 = vadd.f32 0.0, %v766
    %v768 = vpop.f32.mrb[0].mxu0
    %769 = vdwg.mxu0
    %v770 = vsel %vm365, %v767, -inf
    %771 = vmax.xlane.f32.xlu0 %v770
    %v772 = vpop.xlane.xlu0 %771
    %v773 = vsub.f32 %v767, %v772
    %v774 = vmul.f32 %v773, 1.442695
    %v775 = vpow.pop %v774
    %v776 = vsel %vm365, %v775, 0.0
    %777 = vadd.xlane.f32.xlu0 %v776
    %v778 = vpop.xlane.xlu0 %777
    %v779 = vrcp.pop %v778
    %v780 = vmul.f32 %v775, %v779
    %781 = vrot.lane.b32.xlu0 %v357, 112
    %v782 = vpop.permute.xlu0 %781
    %v785 = vsel %vm365, %v780, 0
    %787 = vmatprep.subr.mxu0 0.0
    %788 = vmatpush1.msra.mxu0 %v782
    %789 = vmatprep.subr.mxu0 0.0
    %790 = vmatpush1.msra.mxu0 0.0
    %791 = vmatprep.subr.mxu0 0.0
    %792 = vmatpush1.msra.mxu0 0.0
    %793 = vmatprep.subr.mxu0 0.0
    %794 = vmatpush1.msra.mxu0 0.0
    %795 = vmatprep.subr.mxu0 0.0
    %796 = vmatpush1.msra.mxu0 0.0
    %797 = vmatprep.subr.mxu0 0.0
    %798 = vmatpush1.msra.mxu0 0.0
    %799 = vmatprep.subr.mxu0 0.0
    %800 = vmatpush1.msra.mxu0 0.0
    %801 = vmatprep.subr.mxu0 0.0
    %802 = vmatpush1.msra.mxu0 0.0
    %803 = vmatprep.subr.mxu0 0.0
    %804 = vmatpush1.msra.mxu0 0.0
    %805 = vmatprep.subr.mxu0 0.0
    %806 = vmatpush1.msra.mxu0 0.0
    %807 = vmatprep.subr.mxu0 0.0
    %808 = vmatpush1.msra.mxu0 0.0
    %809 = vmatprep.subr.mxu0 0.0
    %810 = vmatpush1.msra.mxu0 0.0
    %811 = vmatprep.subr.mxu0 0.0
    %812 = vmatpush1.msra.mxu0 0.0
    %813 = vmatprep.subr.mxu0 0.0
    %814 = vmatpush1.msra.mxu0 0.0
    %815 = vmatprep.subr.mxu0 0.0
    %816 = vmatpush1.msra.mxu0 0.0
    %817 = vmatprep.subr.mxu0 0.0
    %818 = vmatpush1.msra.mxu0 0.0
    %819 = vmatprep.subr.mxu0 0.0
    %820 = vmatpush1.msra.mxu0 0.0
    %821 = vmatprep.subr.mxu0 0.0
    %822 = vmatpush1.msra.mxu0 0.0
    %823 = vmatprep.subr.mxu0 0.0
    %824 = vmatpush1.msra.mxu0 0.0
    %825 = vmatprep.subr.mxu0 0.0
    %826 = vmatpush1.msra.mxu0 0.0
    %827 = vmatprep.subr.mxu0 0.0
    %828 = vmatpush1.msra.mxu0 0.0
    %829 = vmatprep.subr.mxu0 0.0
    %830 = vmatpush1.msra.mxu0 0.0
    %831 = vmatprep.subr.mxu0 0.0
    %832 = vmatpush1.msra.mxu0 0.0
    %833 = vmatprep.subr.mxu0 0.0
    %834 = vmatpush1.msra.mxu0 0.0
    %835 = vmatprep.subr.mxu0 0.0
    %836 = vmatpush1.msra.mxu0 0.0
    %837 = vmatprep.subr.mxu0 0.0
    %838 = vmatpush1.msra.mxu0 0.0
    %839 = vmatprep.subr.mxu0 0.0
    %840 = vmatpush1.msra.mxu0 0.0
    %841 = vmatprep.subr.mxu0 0.0
    %842 = vmatpush1.msra.mxu0 0.0
    %843 = vmatprep.subr.mxu0 0.0
    %844 = vmatpush1.msra.mxu0 0.0
    %845 = vmatprep.subr.mxu0 0.0
    %846 = vmatpush1.msra.mxu0 0.0
    %847 = vmatprep.subr.mxu0 0.0
    %848 = vmatpush1.msra.mxu0 0.0
    %849 = vmatprep.subr.mxu0 0.0
    %850 = vmatpush1.msra.mxu0 0.0
    %851 = vmatprep.mubr.f32.mxu0 0.0
    %852 = vmatmul.mubr.f32.gmra.mrb[0].mxu0 %v785
    %v853 = vpop.f32.mrb[0].mxu0
    %v854 = vadd.f32 0.0, %v853
    %v855 = vpop.f32.mrb[0].mxu0
    %856 = vdwg.mxu0
    %857 = vrot.lane.b32.xlu0 %v197, 104
    %v858 = vpop.permute.xlu0 %857
    %859 = vrot.lane.b32.xlu0 %v274, 104
    %v860 = vpop.permute.xlu0 %859
    %v861 = vsel %vm365, %v858, 0
    %v863 = vsel %vm365, %v860, 0
    %865 = vmatprep.subr.mxu0 0.0
    %866 = vmatpush1.xpose.msra.mxu0 %v863
    %867 = vmatprep.subr.mxu0 0.0
    %868 = vmatpush1.xpose.msra.mxu0 0.0
    %869 = vmatprep.subr.mxu0 0.0
    %870 = vmatpush1.xpose.msra.mxu0 0.0
    %871 = vmatprep.subr.mxu0 0.0
    %872 = vmatpush1.xpose.msra.mxu0 0.0
    %873 = vmatprep.subr.mxu0 0.0
    %874 = vmatpush1.xpose.msra.mxu0 0.0
    %875 = vmatprep.subr.mxu0 0.0
    %876 = vmatpush1.xpose.msra.mxu0 0.0
    %877 = vmatprep.subr.mxu0 0.0
    %878 = vmatpush1.xpose.msra.mxu0 0.0
    %879 = vmatprep.subr.mxu0 0.0
    %880 = vmatpush1.xpose.msra.mxu0 0.0
    %881 = vmatprep.subr.mxu0 0.0
    %882 = vmatpush1.xpose.msra.mxu0 0.0
    %883 = vmatprep.subr.mxu0 0.0
    %884 = vmatpush1.xpose.msra.mxu0 0.0
    %885 = vmatprep.subr.mxu0 0.0
    %886 = vmatpush1.xpose.msra.mxu0 0.0
    %887 = vmatprep.subr.mxu0 0.0
    %888 = vmatpush1.xpose.msra.mxu0 0.0
    %889 = vmatprep.subr.mxu0 0.0
    %890 = vmatpush1.xpose.msra.mxu0 0.0
    %891 = vmatprep.subr.mxu0 0.0
    %892 = vmatpush1.xpose.msra.mxu0 0.0
    %893 = vmatprep.subr.mxu0 0.0
    %894 = vmatpush1.xpose.msra.mxu0 0.0
    %895 = vmatprep.subr.mxu0 0.0
    %896 = vmatpush1.xpose.msra.mxu0 0.0
    %897 = vmatprep.subr.mxu0 0.0
    %898 = vmatpush1.xpose.msra.mxu0 0.0
    %899 = vmatprep.subr.mxu0 0.0
    %900 = vmatpush1.xpose.msra.mxu0 0.0
    %901 = vmatprep.subr.mxu0 0.0
    %902 = vmatpush1.xpose.msra.mxu0 0.0
    %903 = vmatprep.subr.mxu0 0.0
    %904 = vmatpush1.xpose.msra.mxu0 0.0
    %905 = vmatprep.subr.mxu0 0.0
    %906 = vmatpush1.xpose.msra.mxu0 0.0
    %907 = vmatprep.subr.mxu0 0.0
    %908 = vmatpush1.xpose.msra.mxu0 0.0
    %909 = vmatprep.subr.mxu0 0.0
    %910 = vmatpush1.xpose.msra.mxu0 0.0
    %911 = vmatprep.subr.mxu0 0.0
    %912 = vmatpush1.xpose.msra.mxu0 0.0
    %913 = vmatprep.subr.mxu0 0.0
    %914 = vmatpush1.xpose.msra.mxu0 0.0
    %915 = vmatprep.subr.mxu0 0.0
    %916 = vmatpush1.xpose.msra.mxu0 0.0
    %917 = vmatprep.subr.mxu0 0.0
    %918 = vmatpush1.xpose.msra.mxu0 0.0
    %919 = vmatprep.subr.mxu0 0.0
    %920 = vmatpush1.xpose.msra.mxu0 0.0
    %921 = vmatprep.subr.mxu0 0.0
    %922 = vmatpush1.xpose.msra.mxu0 0.0
    %923 = vmatprep.subr.mxu0 0.0
    %924 = vmatpush1.xpose.msra.mxu0 0.0
    %925 = vmatprep.subr.mxu0 0.0
    %926 = vmatpush1.xpose.msra.mxu0 0.0
    %927 = vmatprep.subr.mxu0 0.0
    %928 = vmatpush1.xpose.msra.mxu0 0.0
    %929 = vmatprep.mubr.f32.mxu0 0.0
    %930 = vmatmul.mubr.f32.gmra.mrb[0].mxu0 %v861
    %v931 = vpop.f32.mrb[0].mxu0
    %v932 = vadd.f32 0.0, %v931
    %v933 = vpop.f32.mrb[0].mxu0
    %934 = vdwg.mxu0
    %v935 = vsel %vm365, %v932, -inf
    %936 = vmax.xlane.f32.xlu0 %v935
    %v937 = vpop.xlane.xlu0 %936
    %v938 = vsub.f32 %v932, %v937
    %v939 = vmul.f32 %v938, 1.442695
    %v940 = vpow.pop %v939
    %v941 = vsel %vm365, %v940, 0.0
    %942 = vadd.xlane.f32.xlu0 %v941
    %v943 = vpop.xlane.xlu0 %942
    %v944 = vrcp.pop %v943
    %v945 = vmul.f32 %v940, %v944
    %946 = vrot.lane.b32.xlu0 %v357, 104
    %v947 = vpop.permute.xlu0 %946
    %v950 = vsel %vm365, %v945, 0
    %952 = vmatprep.subr.mxu0 0.0
    %953 = vmatpush1.msra.mxu0 %v947
    %954 = vmatprep.subr.mxu0 0.0
    %955 = vmatpush1.msra.mxu0 0.0
    %956 = vmatprep.subr.mxu0 0.0
    %957 = vmatpush1.msra.mxu0 0.0
    %958 = vmatprep.subr.mxu0 0.0
    %959 = vmatpush1.msra.mxu0 0.0
    %960 = vmatprep.subr.mxu0 0.0
    %961 = vmatpush1.msra.mxu0 0.0
    %962 = vmatprep.subr.mxu0 0.0
    %963 = vmatpush1.msra.mxu0 0.0
    %964 = vmatprep.subr.mxu0 0.0
    %965 = vmatpush1.msra.mxu0 0.0
    %966 = vmatprep.subr.mxu0 0.0
    %967 = vmatpush1.msra.mxu0 0.0
    %968 = vmatprep.subr.mxu0 0.0
    %969 = vmatpush1.msra.mxu0 0.0
    %970 = vmatprep.subr.mxu0 0.0
    %971 = vmatpush1.msra.mxu0 0.0
    %972 = vmatprep.subr.mxu0 0.0
    %973 = vmatpush1.msra.mxu0 0.0
    %974 = vmatprep.subr.mxu0 0.0
    %975 = vmatpush1.msra.mxu0 0.0
    %976 = vmatprep.subr.mxu0 0.0
    %977 = vmatpush1.msra.mxu0 0.0
    %978 = vmatprep.subr.mxu0 0.0
    %979 = vmatpush1.msra.mxu0 0.0
    %980 = vmatprep.subr.mxu0 0.0
    %981 = vmatpush1.msra.mxu0 0.0
    %982 = vmatprep.subr.mxu0 0.0
    %983 = vmatpush1.msra.mxu0 0.0
    %984 = vmatprep.subr.mxu0 0.0
    %985 = vmatpush1.msra.mxu0 0.0
    %986 = vmatprep.subr.mxu0 0.0
    %987 = vmatpush1.msra.mxu0 0.0
    %988 = vmatprep.subr.mxu0 0.0
    %989 = vmatpush1.msra.mxu0 0.0
    %990 = vmatprep.subr.mxu0 0.0
    %991 = vmatpush1.msra.mxu0 0.0
    %992 = vmatprep.subr.mxu0 0.0
    %993 = vmatpush1.msra.mxu0 0.0
    %994 = vmatprep.subr.mxu0 0.0
    %995 = vmatpush1.msra.mxu0 0.0
    %996 = vmatprep.subr.mxu0 0.0
    %997 = vmatpush1.msra.mxu0 0.0
    %998 = vmatprep.subr.mxu0 0.0
    %999 = vmatpush1.msra.mxu0 0.0
    %1000 = vmatprep.subr.mxu0 0.0
    %1001 = vmatpush1.msra.mxu0 0.0
    %1002 = vmatprep.subr.mxu0 0.0
    %1003 = vmatpush1.msra.mxu0 0.0
    %1004 = vmatprep.subr.mxu0 0.0
    %1005 = vmatpush1.msra.mxu0 0.0
    %1006 = vmatprep.subr.mxu0 0.0
    %1007 = vmatpush1.msra.mxu0 0.0
    %1008 = vmatprep.subr.mxu0 0.0
    %1009 = vmatpush1.msra.mxu0 0.0
    %1010 = vmatprep.subr.mxu0 0.0
    %1011 = vmatpush1.msra.mxu0 0.0
    %1012 = vmatprep.subr.mxu0 0.0
    %1013 = vmatpush1.msra.mxu0 0.0
    %1014 = vmatprep.subr.mxu0 0.0
    %1015 = vmatpush1.msra.mxu0 0.0
    %1016 = vmatprep.mubr.f32.mxu0 0.0
    %1017 = vmatmul.mubr.f32.gmra.mrb[0].mxu0 %v950
    %v1018 = vpop.f32.mrb[0].mxu0
    %v1019 = vadd.f32 0.0, %v1018
    %v1020 = vpop.f32.mrb[0].mxu0
    %1021 = vdwg.mxu0
    %1023 = vrot.lane.b32.xlu0 %v689, 8
    %v1024 = vpop.permute.xlu0 %1023
    %1027 = vrot.lane.b32.xlu0 %v854, 16
    %v1028 = vpop.permute.xlu0 %1027
    %1031 = vrot.lane.b32.xlu0 %v1019, 24
    %v1032 = vpop.permute.xlu0 %1031
    %v1034 = vsel %vm365, %v523, %v1024
    %vm1035 = vcmask 130048
    %v1036 = vsel %vm1035, %v1034, %v1028
    %vm1037 = vcmask 195584
    %v1038 = vsel %vm1037, %v1036, %v1032
    %v1040 = vsel %vm365, %v198, 0
    %v1043 = vsel %vm365, %v279, 0
    %1045 = vmatprep.subr.mxu0 0.0
    %1046 = vmatpush1.xpose.msra.mxu0 %v1043
    %1047 = vmatprep.subr.mxu0 0.0
    %1048 = vmatpush1.xpose.msra.mxu0 0.0
    %1049 = vmatprep.subr.mxu0 0.0
    %1050 = vmatpush1.xpose.msra.mxu0 0.0
    %1051 = vmatprep.subr.mxu0 0.0
    %1052 = vmatpush1.xpose.msra.mxu0 0.0
    %1053 = vmatprep.subr.mxu0 0.0
    %1054 = vmatpush1.xpose.msra.mxu0 0.0
    %1055 = vmatprep.subr.mxu0 0.0
    %1056 = vmatpush1.xpose.msra.mxu0 0.0
    %1057 = vmatprep.subr.mxu0 0.0
    %1058 = vmatpush1.xpose.msra.mxu0 0.0
    %1059 = vmatprep.subr.mxu0 0.0
    %1060 = vmatpush1.xpose.msra.mxu0 0.0
    %1061 = vmatprep.subr.mxu0 0.0
    %1062 = vmatpush1.xpose.msra.mxu0 0.0
    %1063 = vmatprep.subr.mxu0 0.0
    %1064 = vmatpush1.xpose.msra.mxu0 0.0
    %1065 = vmatprep.subr.mxu0 0.0
    %1066 = vmatpush1.xpose.msra.mxu0 0.0
    %1067 = vmatprep.subr.mxu0 0.0
    %1068 = vmatpush1.xpose.msra.mxu0 0.0
    %1069 = vmatprep.subr.mxu0 0.0
    %1070 = vmatpush1.xpose.msra.mxu0 0.0
    %1071 = vmatprep.subr.mxu0 0.0
    %1072 = vmatpush1.xpose.msra.mxu0 0.0
    %1073 = vmatprep.subr.mxu0 0.0
    %1074 = vmatpush1.xpose.msra.mxu0 0.0
    %1075 = vmatprep.subr.mxu0 0.0
    %1076 = vmatpush1.xpose.msra.mxu0 0.0
    %1077 = vmatprep.subr.mxu0 0.0
    %1078 = vmatpush1.xpose.msra.mxu0 0.0
    %1079 = vmatprep.subr.mxu0 0.0
    %1080 = vmatpush1.xpose.msra.mxu0 0.0
    %1081 = vmatprep.subr.mxu0 0.0
    %1082 = vmatpush1.xpose.msra.mxu0 0.0
    %1083 = vmatprep.subr.mxu0 0.0
    %1084 = vmatpush1.xpose.msra.mxu0 0.0
    %1085 = vmatprep.subr.mxu0 0.0
    %1086 = vmatpush1.xpose.msra.mxu0 0.0
    %1087 = vmatprep.subr.mxu0 0.0
    %1088 = vmatpush1.xpose.msra.mxu0 0.0
    %1089 = vmatprep.subr.mxu0 0.0
    %1090 = vmatpush1.xpose.msra.mxu0 0.0
    %1091 = vmatprep.subr.mxu0 0.0
    %1092 = vmatpush1.xpose.msra.mxu0 0.0
    %1093 = vmatprep.subr.mxu0 0.0
    %1094 = vmatpush1.xpose.msra.mxu0 0.0
    %1095 = vmatprep.subr.mxu0 0.0
    %1096 = vmatpush1.xpose.msra.mxu0 0.0
    %1097 = vmatprep.subr.mxu0 0.0
    %1098 = vmatpush1.xpose.msra.mxu0 0.0
    %1099 = vmatprep.subr.mxu0 0.0
    %1100 = vmatpush1.xpose.msra.mxu0 0.0
    %1101 = vmatprep.subr.mxu0 0.0
    %1102 = vmatpush1.xpose.msra.mxu0 0.0
    %1103 = vmatprep.subr.mxu0 0.0
    %1104 = vmatpush1.xpose.msra.mxu0 0.0
    %1105 = vmatprep.subr.mxu0 0.0
    %1106 = vmatpush1.xpose.msra.mxu0 0.0
    %1107 = vmatprep.subr.mxu0 0.0
    %1108 = vmatpush1.xpose.msra.mxu0 0.0
    %1109 = vmatprep.mubr.f32.mxu0 0.0
    %1110 = vmatmul.mubr.f32.gmra.mrb[0].mxu0 %v1040
    %v1111 = vpop.f32.mrb[0].mxu0
    %v1112 = vadd.f32 0.0, %v1111
    %v1113 = vpop.f32.mrb[0].mxu0
    %1114 = vdwg.mxu0
    %v1115 = vsel %vm365, %v1112, -inf
    %1116 = vmax.xlane.f32.xlu0 %v1115
    %v1117 = vpop.xlane.xlu0 %1116
    %v1118 = vsub.f32 %v1112, %v1117
    %v1119 = vmul.f32 %v1118, 1.442695
    %v1120 = vpow.pop %v1119
    %v1121 = vsel %vm365, %v1120, 0.0
    %1122 = vadd.xlane.f32.xlu0 %v1121
    %v1123 = vpop.xlane.xlu0 %1122
    %v1124 = vrcp.pop %v1123
    %v1125 = vmul.f32 %v1120, %v1124
    %v1127 = vsel %vm365, %v1125, 0
    %1129 = vmatprep.subr.mxu0 0.0
    %1130 = vmatpush1.msra.mxu0 %v362
    %1131 = vmatprep.subr.mxu0 0.0
    %1132 = vmatpush1.msra.mxu0 0.0
    %1133 = vmatprep.subr.mxu0 0.0
    %1134 = vmatpush1.msra.mxu0 0.0
    %1135 = vmatprep.subr.mxu0 0.0
    %1136 = vmatpush1.msra.mxu0 0.0
    %1137 = vmatprep.subr.mxu0 0.0
    %1138 = vmatpush1.msra.mxu0 0.0
    %1139 = vmatprep.subr.mxu0 0.0
    %1140 = vmatpush1.msra.mxu0 0.0
    %1141 = vmatprep.subr.mxu0 0.0
    %1142 = vmatpush1.msra.mxu0 0.0
    %1143 = vmatprep.subr.mxu0 0.0
    %1144 = vmatpush1.msra.mxu0 0.0
    %1145 = vmatprep.subr.mxu0 0.0
    %1146 = vmatpush1.msra.mxu0 0.0
    %1147 = vmatprep.subr.mxu0 0.0
    %1148 = vmatpush1.msra.mxu0 0.0
    %1149 = vmatprep.subr.mxu0 0.0
    %1150 = vmatpush1.msra.mxu0 0.0
    %1151 = vmatprep.subr.mxu0 0.0
    %1152 = vmatpush1.msra.mxu0 0.0
    %1153 = vmatprep.subr.mxu0 0.0
    %1154 = vmatpush1.msra.mxu0 0.0
    %1155 = vmatprep.subr.mxu0 0.0
    %1156 = vmatpush1.msra.mxu0 0.0
    %1157 = vmatprep.subr.mxu0 0.0
    %1158 = vmatpush1.msra.mxu0 0.0
    %1159 = vmatprep.subr.mxu0 0.0
    %1160 = vmatpush1.msra.mxu0 0.0
    %1161 = vmatprep.subr.mxu0 0.0
    %1162 = vmatpush1.msra.mxu0 0.0
    %1163 = vmatprep.subr.mxu0 0.0
    %1164 = vmatpush1.msra.mxu0 0.0
    %1165 = vmatprep.subr.mxu0 0.0
    %1166 = vmatpush1.msra.mxu0 0.0
    %1167 = vmatprep.subr.mxu0 0.0
    %1168 = vmatpush1.msra.mxu0 0.0
    %1169 = vmatprep.subr.mxu0 0.0
    %1170 = vmatpush1.msra.mxu0 0.0
    %1171 = vmatprep.subr.mxu0 0.0
    %1172 = vmatpush1.msra.mxu0 0.0
    %1173 = vmatprep.subr.mxu0 0.0
    %1174 = vmatpush1.msra.mxu0 0.0
    %1175 = vmatprep.subr.mxu0 0.0
    %1176 = vmatpush1.msra.mxu0 0.0
    %1177 = vmatprep.subr.mxu0 0.0
    %1178 = vmatpush1.msra.mxu0 0.0
    %1179 = vmatprep.subr.mxu0 0.0
    %1180 = vmatpush1.msra.mxu0 0.0
    %1181 = vmatprep.subr.mxu0 0.0
    %1182 = vmatpush1.msra.mxu0 0.0
    %1183 = vmatprep.subr.mxu0 0.0
    %1184 = vmatpush1.msra.mxu0 0.0
    %1185 = vmatprep.subr.mxu0 0.0
    %1186 = vmatpush1.msra.mxu0 0.0
    %1187 = vmatprep.subr.mxu0 0.0
    %1188 = vmatpush1.msra.mxu0 0.0
    %1189 = vmatprep.subr.mxu0 0.0
    %1190 = vmatpush1.msra.mxu0 0.0
    %1191 = vmatprep.subr.mxu0 0.0
    %1192 = vmatpush1.msra.mxu0 0.0
    %1193 = vmatprep.mubr.f32.mxu0 0.0
    %1194 = vmatmul.mubr.f32.gmra.mrb[0].mxu0 %v1127
    %v1195 = vpop.f32.mrb[0].mxu0
    %v1196 = vadd.f32 0.0, %v1195
    %v1197 = vpop.f32.mrb[0].mxu0
    %1198 = vdwg.mxu0
    %1199 = vrot.lane.b32.xlu0 %v198, 120
    %v1200 = vpop.permute.xlu0 %1199
    %1201 = vrot.lane.b32.xlu0 %v279, 120
    %v1202 = vpop.permute.xlu0 %1201
    %v1203 = vsel %vm365, %v1200, 0
    %v1205 = vsel %vm365, %v1202, 0
    %1207 = vmatprep.subr.mxu0 0.0
    %1208 = vmatpush1.xpose.msra.mxu0 %v1205
    %1209 = vmatprep.subr.mxu0 0.0
    %1210 = vmatpush1.xpose.msra.mxu0 0.0
    %1211 = vmatprep.subr.mxu0 0.0
    %1212 = vmatpush1.xpose.msra.mxu0 0.0
    %1213 = vmatprep.subr.mxu0 0.0
    %1214 = vmatpush1.xpose.msra.mxu0 0.0
    %1215 = vmatprep.subr.mxu0 0.0
    %1216 = vmatpush1.xpose.msra.mxu0 0.0
    %1217 = vmatprep.subr.mxu0 0.0
    %1218 = vmatpush1.xpose.msra.mxu0 0.0
    %1219 = vmatprep.subr.mxu0 0.0
    %1220 = vmatpush1.xpose.msra.mxu0 0.0
    %1221 = vmatprep.subr.mxu0 0.0
    %1222 = vmatpush1.xpose.msra.mxu0 0.0
    %1223 = vmatprep.subr.mxu0 0.0
    %1224 = vmatpush1.xpose.msra.mxu0 0.0
    %1225 = vmatprep.subr.mxu0 0.0
    %1226 = vmatpush1.xpose.msra.mxu0 0.0
    %1227 = vmatprep.subr.mxu0 0.0
    %1228 = vmatpush1.xpose.msra.mxu0 0.0
    %1229 = vmatprep.subr.mxu0 0.0
    %1230 = vmatpush1.xpose.msra.mxu0 0.0
    %1231 = vmatprep.subr.mxu0 0.0
    %1232 = vmatpush1.xpose.msra.mxu0 0.0
    %1233 = vmatprep.subr.mxu0 0.0
    %1234 = vmatpush1.xpose.msra.mxu0 0.0
    %1235 = vmatprep.subr.mxu0 0.0
    %1236 = vmatpush1.xpose.msra.mxu0 0.0
    %1237 = vmatprep.subr.mxu0 0.0
    %1238 = vmatpush1.xpose.msra.mxu0 0.0
    %1239 = vmatprep.subr.mxu0 0.0
    %1240 = vmatpush1.xpose.msra.mxu0 0.0
    %1241 = vmatprep.subr.mxu0 0.0
    %1242 = vmatpush1.xpose.msra.mxu0 0.0
    %1243 = vmatprep.subr.mxu0 0.0
    %1244 = vmatpush1.xpose.msra.mxu0 0.0
    %1245 = vmatprep.subr.mxu0 0.0
    %1246 = vmatpush1.xpose.msra.mxu0 0.0
    %1247 = vmatprep.subr.mxu0 0.0
    %1248 = vmatpush1.xpose.msra.mxu0 0.0
    %1249 = vmatprep.subr.mxu0 0.0
    %1250 = vmatpush1.xpose.msra.mxu0 0.0
    %1251 = vmatprep.subr.mxu0 0.0
    %1252 = vmatpush1.xpose.msra.mxu0 0.0
    %1253 = vmatprep.subr.mxu0 0.0
    %1254 = vmatpush1.xpose.msra.mxu0 0.0
    %1255 = vmatprep.subr.mxu0 0.0
    %1256 = vmatpush1.xpose.msra.mxu0 0.0
    %1257 = vmatprep.subr.mxu0 0.0
    %1258 = vmatpush1.xpose.msra.mxu0 0.0
    %1259 = vmatprep.subr.mxu0 0.0
    %1260 = vmatpush1.xpose.msra.mxu0 0.0
    %1261 = vmatprep.subr.mxu0 0.0
    %1262 = vmatpush1.xpose.msra.mxu0 0.0
    %1263 = vmatprep.subr.mxu0 0.0
    %1264 = vmatpush1.xpose.msra.mxu0 0.0
    %1265 = vmatprep.subr.mxu0 0.0
    %1266 = vmatpush1.xpose.msra.mxu0 0.0
    %1267 = vmatprep.subr.mxu0 0.0
    %1268 = vmatpush1.xpose.msra.mxu0 0.0
    %1269 = vmatprep.subr.mxu0 0.0
    %1270 = vmatpush1.xpose.msra.mxu0 0.0
    %1271 = vmatprep.mubr.f32.mxu0 0.0
    %1272 = vmatmul.mubr.f32.gmra.mrb[0].mxu0 %v1203
    %v1273 = vpop.f32.mrb[0].mxu0
    %v1274 = vadd.f32 0.0, %v1273
    %v1275 = vpop.f32.mrb[0].mxu0
    %1276 = vdwg.mxu0
    %v1277 = vsel %vm365, %v1274, -inf
    %1278 = vmax.xlane.f32.xlu0 %v1277
    %v1279 = vpop.xlane.xlu0 %1278
    %v1280 = vsub.f32 %v1274, %v1279
    %v1281 = vmul.f32 %v1280, 1.442695
    %v1282 = vpow.pop %v1281
    %v1283 = vsel %vm365, %v1282, 0.0
    %1284 = vadd.xlane.f32.xlu0 %v1283
    %v1285 = vpop.xlane.xlu0 %1284
    %v1286 = vrcp.pop %v1285
    %v1287 = vmul.f32 %v1282, %v1286
    %1289 = vrot.lane.b32.xlu0 %v362, 120
    %v1290 = vpop.permute.xlu0 %1289
    %v1293 = vsel %vm365, %v1287, 0
    %1295 = vmatprep.subr.mxu0 0.0
    %1296 = vmatpush1.msra.mxu0 %v1290
    %1297 = vmatprep.subr.mxu0 0.0
    %1298 = vmatpush1.msra.mxu0 0.0
    %1299 = vmatprep.subr.mxu0 0.0
    %1300 = vmatpush1.msra.mxu0 0.0
    %1301 = vmatprep.subr.mxu0 0.0
    %1302 = vmatpush1.msra.mxu0 0.0
    %1303 = vmatprep.subr.mxu0 0.0
    %1304 = vmatpush1.msra.mxu0 0.0
    %1305 = vmatprep.subr.mxu0 0.0
    %1306 = vmatpush1.msra.mxu0 0.0
    %1307 = vmatprep.subr.mxu0 0.0
    %1308 = vmatpush1.msra.mxu0 0.0
    %1309 = vmatprep.subr.mxu0 0.0
    %1310 = vmatpush1.msra.mxu0 0.0
    %1311 = vmatprep.subr.mxu0 0.0
    %1312 = vmatpush1.msra.mxu0 0.0
    %1313 = vmatprep.subr.mxu0 0.0
    %1314 = vmatpush1.msra.mxu0 0.0
    %1315 = vmatprep.subr.mxu0 0.0
    %1316 = vmatpush1.msra.mxu0 0.0
    %1317 = vmatprep.subr.mxu0 0.0
    %1318 = vmatpush1.msra.mxu0 0.0
    %1319 = vmatprep.subr.mxu0 0.0
    %1320 = vmatpush1.msra.mxu0 0.0
    %1321 = vmatprep.subr.mxu0 0.0
    %1322 = vmatpush1.msra.mxu0 0.0
    %1323 = vmatprep.subr.mxu0 0.0
    %1324 = vmatpush1.msra.mxu0 0.0
    %1325 = vmatprep.subr.mxu0 0.0
    %1326 = vmatpush1.msra.mxu0 0.0
    %1327 = vmatprep.subr.mxu0 0.0
    %1328 = vmatpush1.msra.mxu0 0.0
    %1329 = vmatprep.subr.mxu0 0.0
    %1330 = vmatpush1.msra.mxu0 0.0
    %1331 = vmatprep.subr.mxu0 0.0
    %1332 = vmatpush1.msra.mxu0 0.0
    %1333 = vmatprep.subr.mxu0 0.0
    %1334 = vmatpush1.msra.mxu0 0.0
    %1335 = vmatprep.subr.mxu0 0.0
    %1336 = vmatpush1.msra.mxu0 0.0
    %1337 = vmatprep.subr.mxu0 0.0
    %1338 = vmatpush1.msra.mxu0 0.0
    %1339 = vmatprep.subr.mxu0 0.0
    %1340 = vmatpush1.msra.mxu0 0.0
    %1341 = vmatprep.subr.mxu0 0.0
    %1342 = vmatpush1.msra.mxu0 0.0
    %1343 = vmatprep.subr.mxu0 0.0
    %1344 = vmatpush1.msra.mxu0 0.0
    %1345 = vmatprep.subr.mxu0 0.0
    %1346 = vmatpush1.msra.mxu0 0.0
    %1347 = vmatprep.subr.mxu0 0.0
    %1348 = vmatpush1.msra.mxu0 0.0
    %1349 = vmatprep.subr.mxu0 0.0
    %1350 = vmatpush1.msra.mxu0 0.0
    %1351 = vmatprep.subr.mxu0 0.0
    %1352 = vmatpush1.msra.mxu0 0.0
    %1353 = vmatprep.subr.mxu0 0.0
    %1354 = vmatpush1.msra.mxu0 0.0
    %1355 = vmatprep.subr.mxu0 0.0
    %1356 = vmatpush1.msra.mxu0 0.0
    %1357 = vmatprep.subr.mxu0 0.0
    %1358 = vmatpush1.msra.mxu0 0.0
    %1359 = vmatprep.mubr.f32.mxu0 0.0
    %1360 = vmatmul.mubr.f32.gmra.mrb[0].mxu0 %v1293
    %v1361 = vpop.f32.mrb[0].mxu0
    %v1362 = vadd.f32 0.0, %v1361
    %v1363 = vpop.f32.mrb[0].mxu0
    %1364 = vdwg.mxu0
    %1365 = vrot.lane.b32.xlu0 %v198, 112
    %v1366 = vpop.permute.xlu0 %1365
    %1367 = vrot.lane.b32.xlu0 %v279, 112
    %v1368 = vpop.permute.xlu0 %1367
    %v1369 = vsel %vm365, %v1366, 0
    %v1371 = vsel %vm365, %v1368, 0
    %1373 = vmatprep.subr.mxu0 0.0
    %1374 = vmatpush1.xpose.msra.mxu0 %v1371
    %1375 = vmatprep.subr.mxu0 0.0
    %1376 = vmatpush1.xpose.msra.mxu0 0.0
    %1377 = vmatprep.subr.mxu0 0.0
    %1378 = vmatpush1.xpose.msra.mxu0 0.0
    %1379 = vmatprep.subr.mxu0 0.0
    %1380 = vmatpush1.xpose.msra.mxu0 0.0
    %1381 = vmatprep.subr.mxu0 0.0
    %1382 = vmatpush1.xpose.msra.mxu0 0.0
    %1383 = vmatprep.subr.mxu0 0.0
    %1384 = vmatpush1.xpose.msra.mxu0 0.0
    %1385 = vmatprep.subr.mxu0 0.0
    %1386 = vmatpush1.xpose.msra.mxu0 0.0
    %1387 = vmatprep.subr.mxu0 0.0
    %1388 = vmatpush1.xpose.msra.mxu0 0.0
    %1389 = vmatprep.subr.mxu0 0.0
    %1390 = vmatpush1.xpose.msra.mxu0 0.0
    %1391 = vmatprep.subr.mxu0 0.0
    %1392 = vmatpush1.xpose.msra.mxu0 0.0
    %1393 = vmatprep.subr.mxu0 0.0
    %1394 = vmatpush1.xpose.msra.mxu0 0.0
    %1395 = vmatprep.subr.mxu0 0.0
    %1396 = vmatpush1.xpose.msra.mxu0 0.0
    %1397 = vmatprep.subr.mxu0 0.0
    %1398 = vmatpush1.xpose.msra.mxu0 0.0
    %1399 = vmatprep.subr.mxu0 0.0
    %1400 = vmatpush1.xpose.msra.mxu0 0.0
    %1401 = vmatprep.subr.mxu0 0.0
    %1402 = vmatpush1.xpose.msra.mxu0 0.0
    %1403 = vmatprep.subr.mxu0 0.0
    %1404 = vmatpush1.xpose.msra.mxu0 0.0
    %1405 = vmatprep.subr.mxu0 0.0
    %1406 = vmatpush1.xpose.msra.mxu0 0.0
    %1407 = vmatprep.subr.mxu0 0.0
    %1408 = vmatpush1.xpose.msra.mxu0 0.0
    %1409 = vmatprep.subr.mxu0 0.0
    %1410 = vmatpush1.xpose.msra.mxu0 0.0
    %1411 = vmatprep.subr.mxu0 0.0
    %1412 = vmatpush1.xpose.msra.mxu0 0.0
    %1413 = vmatprep.subr.mxu0 0.0
    %1414 = vmatpush1.xpose.msra.mxu0 0.0
    %1415 = vmatprep.subr.mxu0 0.0
    %1416 = vmatpush1.xpose.msra.mxu0 0.0
    %1417 = vmatprep.subr.mxu0 0.0
    %1418 = vmatpush1.xpose.msra.mxu0 0.0
    %1419 = vmatprep.subr.mxu0 0.0
    %1420 = vmatpush1.xpose.msra.mxu0 0.0
    %1421 = vmatprep.subr.mxu0 0.0
    %1422 = vmatpush1.xpose.msra.mxu0 0.0
    %1423 = vmatprep.subr.mxu0 0.0
    %1424 = vmatpush1.xpose.msra.mxu0 0.0
    %1425 = vmatprep.subr.mxu0 0.0
    %1426 = vmatpush1.xpose.msra.mxu0 0.0
    %1427 = vmatprep.subr.mxu0 0.0
    %1428 = vmatpush1.xpose.msra.mxu0 0.0
    %1429 = vmatprep.subr.mxu0 0.0
    %1430 = vmatpush1.xpose.msra.mxu0 0.0
    %1431 = vmatprep.subr.mxu0 0.0
    %1432 = vmatpush1.xpose.msra.mxu0 0.0
    %1433 = vmatprep.subr.mxu0 0.0
    %1434 = vmatpush1.xpose.msra.mxu0 0.0
    %1435 = vmatprep.subr.mxu0 0.0
    %1436 = vmatpush1.xpose.msra.mxu0 0.0
    %1437 = vmatprep.mubr.f32.mxu0 0.0
    %1438 = vmatmul.mubr.f32.gmra.mrb[0].mxu0 %v1369
    %v1439 = vpop.f32.mrb[0].mxu0
    %v1440 = vadd.f32 0.0, %v1439
    %v1441 = vpop.f32.mrb[0].mxu0
    %1442 = vdwg.mxu0
    %v1443 = vsel %vm365, %v1440, -inf
    %1444 = vmax.xlane.f32.xlu0 %v1443
    %v1445 = vpop.xlane.xlu0 %1444
    %v1446 = vsub.f32 %v1440, %v1445
    %v1447 = vmul.f32 %v1446, 1.442695
    %v1448 = vpow.pop %v1447
    %v1449 = vsel %vm365, %v1448, 0.0
    %1450 = vadd.xlane.f32.xlu0 %v1449
    %v1451 = vpop.xlane.xlu0 %1450
    %v1452 = vrcp.pop %v1451
    %v1453 = vmul.f32 %v1448, %v1452
    %1454 = vrot.lane.b32.xlu0 %v362, 112
    %v1455 = vpop.permute.xlu0 %1454
    %v1458 = vsel %vm365, %v1453, 0
    %1460 = vmatprep.subr.mxu0 0.0
    %1461 = vmatpush1.msra.mxu0 %v1455
    %1462 = vmatprep.subr.mxu0 0.0
    %1463 = vmatpush1.msra.mxu0 0.0
    %1464 = vmatprep.subr.mxu0 0.0
    %1465 = vmatpush1.msra.mxu0 0.0
    %1466 = vmatprep.subr.mxu0 0.0
    %1467 = vmatpush1.msra.mxu0 0.0
    %1468 = vmatprep.subr.mxu0 0.0
    %1469 = vmatpush1.msra.mxu0 0.0
    %1470 = vmatprep.subr.mxu0 0.0
    %1471 = vmatpush1.msra.mxu0 0.0
    %1472 = vmatprep.subr.mxu0 0.0
    %1473 = vmatpush1.msra.mxu0 0.0
    %1474 = vmatprep.subr.mxu0 0.0
    %1475 = vmatpush1.msra.mxu0 0.0
    %1476 = vmatprep.subr.mxu0 0.0
    %1477 = vmatpush1.msra.mxu0 0.0
    %1478 = vmatprep.subr.mxu0 0.0
    %1479 = vmatpush1.msra.mxu0 0.0
    %1480 = vmatprep.subr.mxu0 0.0
    %1481 = vmatpush1.msra.mxu0 0.0
    %1482 = vmatprep.subr.mxu0 0.0
    %1483 = vmatpush1.msra.mxu0 0.0
    %1484 = vmatprep.subr.mxu0 0.0
    %1485 = vmatpush1.msra.mxu0 0.0
    %1486 = vmatprep.subr.mxu0 0.0
    %1487 = vmatpush1.msra.mxu0 0.0
    %1488 = vmatprep.subr.mxu0 0.0
    %1489 = vmatpush1.msra.mxu0 0.0
    %1490 = vmatprep.subr.mxu0 0.0
    %1491 = vmatpush1.msra.mxu0 0.0
    %1492 = vmatprep.subr.mxu0 0.0
    %1493 = vmatpush1.msra.mxu0 0.0
    %1494 = vmatprep.subr.mxu0 0.0
    %1495 = vmatpush1.msra.mxu0 0.0
    %1496 = vmatprep.subr.mxu0 0.0
    %1497 = vmatpush1.msra.mxu0 0.0
    %1498 = vmatprep.subr.mxu0 0.0
    %1499 = vmatpush1.msra.mxu0 0.0
    %1500 = vmatprep.subr.mxu0 0.0
    %1501 = vmatpush1.msra.mxu0 0.0
    %1502 = vmatprep.subr.mxu0 0.0
    %1503 = vmatpush1.msra.mxu0 0.0
    %1504 = vmatprep.subr.mxu0 0.0
    %1505 = vmatpush1.msra.mxu0 0.0
    %1506 = vmatprep.subr.mxu0 0.0
    %1507 = vmatpush1.msra.mxu0 0.0
    %1508 = vmatprep.subr.mxu0 0.0
    %1509 = vmatpush1.msra.mxu0 0.0
    %1510 = vmatprep.subr.mxu0 0.0
    %1511 = vmatpush1.msra.mxu0 0.0
    %1512 = vmatprep.subr.mxu0 0.0
    %1513 = vmatpush1.msra.mxu0 0.0
    %1514 = vmatprep.subr.mxu0 0.0
    %1515 = vmatpush1.msra.mxu0 0.0
    %1516 = vmatprep.subr.mxu0 0.0
    %1517 = vmatpush1.msra.mxu0 0.0
    %1518 = vmatprep.subr.mxu0 0.0
    %1519 = vmatpush1.msra.mxu0 0.0
    %1520 = vmatprep.subr.mxu0 0.0
    %1521 = vmatpush1.msra.mxu0 0.0
    %1522 = vmatprep.subr.mxu0 0.0
    %1523 = vmatpush1.msra.mxu0 0.0
    %1524 = vmatprep.mubr.f32.mxu0 0.0
    %1525 = vmatmul.mubr.f32.gmra.mrb[0].mxu0 %v1458
    %v1526 = vpop.f32.mrb[0].mxu0
    %v1527 = vadd.f32 0.0, %v1526
    %v1528 = vpop.f32.mrb[0].mxu0
    %1529 = vdwg.mxu0
    %1530 = vrot.lane.b32.xlu0 %v198, 104
    %v1531 = vpop.permute.xlu0 %1530
    %1532 = vrot.lane.b32.xlu0 %v279, 104
    %v1533 = vpop.permute.xlu0 %1532
    %v1534 = vsel %vm365, %v1531, 0
    %v1536 = vsel %vm365, %v1533, 0
    %1538 = vmatprep.subr.mxu0 0.0
    %1539 = vmatpush1.xpose.msra.mxu0 %v1536
    %1540 = vmatprep.subr.mxu0 0.0
    %1541 = vmatpush1.xpose.msra.mxu0 0.0
    %1542 = vmatprep.subr.mxu0 0.0
    %1543 = vmatpush1.xpose.msra.mxu0 0.0
    %1544 = vmatprep.subr.mxu0 0.0
    %1545 = vmatpush1.xpose.msra.mxu0 0.0
    %1546 = vmatprep.subr.mxu0 0.0
    %1547 = vmatpush1.xpose.msra.mxu0 0.0
    %1548 = vmatprep.subr.mxu0 0.0
    %1549 = vmatpush1.xpose.msra.mxu0 0.0
    %1550 = vmatprep.subr.mxu0 0.0
    %1551 = vmatpush1.xpose.msra.mxu0 0.0
    %1552 = vmatprep.subr.mxu0 0.0
    %1553 = vmatpush1.xpose.msra.mxu0 0.0
    %1554 = vmatprep.subr.mxu0 0.0
    %1555 = vmatpush1.xpose.msra.mxu0 0.0
    %1556 = vmatprep.subr.mxu0 0.0
    %1557 = vmatpush1.xpose.msra.mxu0 0.0
    %1558 = vmatprep.subr.mxu0 0.0
    %1559 = vmatpush1.xpose.msra.mxu0 0.0
    %1560 = vmatprep.subr.mxu0 0.0
    %1561 = vmatpush1.xpose.msra.mxu0 0.0
    %1562 = vmatprep.subr.mxu0 0.0
    %1563 = vmatpush1.xpose.msra.mxu0 0.0
    %1564 = vmatprep.subr.mxu0 0.0
    %1565 = vmatpush1.xpose.msra.mxu0 0.0
    %1566 = vmatprep.subr.mxu0 0.0
    %1567 = vmatpush1.xpose.msra.mxu0 0.0
    %1568 = vmatprep.subr.mxu0 0.0
    %1569 = vmatpush1.xpose.msra.mxu0 0.0
    %1570 = vmatprep.subr.mxu0 0.0
    %1571 = vmatpush1.xpose.msra.mxu0 0.0
    %1572 = vmatprep.subr.mxu0 0.0
    %1573 = vmatpush1.xpose.msra.mxu0 0.0
    %1574 = vmatprep.subr.mxu0 0.0
    %1575 = vmatpush1.xpose.msra.mxu0 0.0
    %1576 = vmatprep.subr.mxu0 0.0
    %1577 = vmatpush1.xpose.msra.mxu0 0.0
    %1578 = vmatprep.subr.mxu0 0.0
    %1579 = vmatpush1.xpose.msra.mxu0 0.0
    %1580 = vmatprep.subr.mxu0 0.0
    %1581 = vmatpush1.xpose.msra.mxu0 0.0
    %1582 = vmatprep.subr.mxu0 0.0
    %1583 = vmatpush1.xpose.msra.mxu0 0.0
    %1584 = vmatprep.subr.mxu0 0.0
    %1585 = vmatpush1.xpose.msra.mxu0 0.0
    %1586 = vmatprep.subr.mxu0 0.0
    %1587 = vmatpush1.xpose.msra.mxu0 0.0
    %1588 = vmatprep.subr.mxu0 0.0
    %1589 = vmatpush1.xpose.msra.mxu0 0.0
    %1590 = vmatprep.subr.mxu0 0.0
    %1591 = vmatpush1.xpose.msra.mxu0 0.0
    %1592 = vmatprep.subr.mxu0 0.0
    %1593 = vmatpush1.xpose.msra.mxu0 0.0
    %1594 = vmatprep.subr.mxu0 0.0
    %1595 = vmatpush1.xpose.msra.mxu0 0.0
    %1596 = vmatprep.subr.mxu0 0.0
    %1597 = vmatpush1.xpose.msra.mxu0 0.0
    %1598 = vmatprep.subr.mxu0 0.0
    %1599 = vmatpush1.xpose.msra.mxu0 0.0
    %1600 = vmatprep.subr.mxu0 0.0
    %1601 = vmatpush1.xpose.msra.mxu0 0.0
    %1602 = vmatprep.mubr.f32.mxu0 0.0
    %1603 = vmatmul.mubr.f32.gmra.mrb[0].mxu0 %v1534
    %v1604 = vpop.f32.mrb[0].mxu0
    %v1605 = vadd.f32 0.0, %v1604
    %v1606 = vpop.f32.mrb[0].mxu0
    %1607 = vdwg.mxu0
    %v1608 = vsel %vm365, %v1605, -inf
    %1609 = vmax.xlane.f32.xlu0 %v1608
    %v1610 = vpop.xlane.xlu0 %1609
    %v1611 = vsub.f32 %v1605, %v1610
    %v1612 = vmul.f32 %v1611, 1.442695
    %v1613 = vpow.pop %v1612
    %v1614 = vsel %vm365, %v1613, 0.0
    %1615 = vadd.xlane.f32.xlu0 %v1614
    %v1616 = vpop.xlane.xlu0 %1615
    %v1617 = vrcp.pop %v1616
    %v1618 = vmul.f32 %v1613, %v1617
    %1619 = vrot.lane.b32.xlu0 %v362, 104
    %v1620 = vpop.permute.xlu0 %1619
    %v1623 = vsel %vm365, %v1618, 0
    %1625 = vmatprep.subr.mxu0 0.0
    %1626 = vmatpush1.msra.mxu0 %v1620
    %1627 = vmatprep.subr.mxu0 0.0
    %1628 = vmatpush1.msra.mxu0 0.0
    %1629 = vmatprep.subr.mxu0 0.0
    %1630 = vmatpush1.msra.mxu0 0.0
    %1631 = vmatprep.subr.mxu0 0.0
    %1632 = vmatpush1.msra.mxu0 0.0
    %1633 = vmatprep.subr.mxu0 0.0
    %1634 = vmatpush1.msra.mxu0 0.0
    %1635 = vmatprep.subr.mxu0 0.0
    %1636 = vmatpush1.msra.mxu0 0.0
    %1637 = vmatprep.subr.mxu0 0.0
    %1638 = vmatpush1.msra.mxu0 0.0
    %1639 = vmatprep.subr.mxu0 0.0
    %1640 = vmatpush1.msra.mxu0 0.0
    %1641 = vmatprep.subr.mxu0 0.0
    %1642 = vmatpush1.msra.mxu0 0.0
    %1643 = vmatprep.subr.mxu0 0.0
    %1644 = vmatpush1.msra.mxu0 0.0
    %1645 = vmatprep.subr.mxu0 0.0
    %1646 = vmatpush1.msra.mxu0 0.0
    %1647 = vmatprep.subr.mxu0 0.0
    %1648 = vmatpush1.msra.mxu0 0.0
    %1649 = vmatprep.subr.mxu0 0.0
    %1650 = vmatpush1.msra.mxu0 0.0
    %1651 = vmatprep.subr.mxu0 0.0
    %1652 = vmatpush1.msra.mxu0 0.0
    %1653 = vmatprep.subr.mxu0 0.0
    %1654 = vmatpush1.msra.mxu0 0.0
    %1655 = vmatprep.subr.mxu0 0.0
    %1656 = vmatpush1.msra.mxu0 0.0
    %1657 = vmatprep.subr.mxu0 0.0
    %1658 = vmatpush1.msra.mxu0 0.0
    %1659 = vmatprep.subr.mxu0 0.0
    %1660 = vmatpush1.msra.mxu0 0.0
    %1661 = vmatprep.subr.mxu0 0.0
    %1662 = vmatpush1.msra.mxu0 0.0
    %1663 = vmatprep.subr.mxu0 0.0
    %1664 = vmatpush1.msra.mxu0 0.0
    %1665 = vmatprep.subr.mxu0 0.0
    %1666 = vmatpush1.msra.mxu0 0.0
    %1667 = vmatprep.subr.mxu0 0.0
    %1668 = vmatpush1.msra.mxu0 0.0
    %1669 = vmatprep.subr.mxu0 0.0
    %1670 = vmatpush1.msra.mxu0 0.0
    %1671 = vmatprep.subr.mxu0 0.0
    %1672 = vmatpush1.msra.mxu0 0.0
    %1673 = vmatprep.subr.mxu0 0.0
    %1674 = vmatpush1.msra.mxu0 0.0
    %1675 = vmatprep.subr.mxu0 0.0
    %1676 = vmatpush1.msra.mxu0 0.0
    %1677 = vmatprep.subr.mxu0 0.0
    %1678 = vmatpush1.msra.mxu0 0.0
    %1679 = vmatprep.subr.mxu0 0.0
    %1680 = vmatpush1.msra.mxu0 0.0
    %1681 = vmatprep.subr.mxu0 0.0
    %1682 = vmatpush1.msra.mxu0 0.0
    %1683 = vmatprep.subr.mxu0 0.0
    %1684 = vmatpush1.msra.mxu0 0.0
    %1685 = vmatprep.subr.mxu0 0.0
    %1686 = vmatpush1.msra.mxu0 0.0
    %1687 = vmatprep.subr.mxu0 0.0
    %1688 = vmatpush1.msra.mxu0 0.0
    %1689 = vmatprep.mubr.f32.mxu0 0.0
    %1690 = vmatmul.mubr.f32.gmra.mrb[0].mxu0 %v1623
    %v1691 = vpop.f32.mrb[0].mxu0
    %v1692 = vadd.f32 0.0, %v1691
    %v1693 = vpop.f32.mrb[0].mxu0
    %1694 = vdwg.mxu0
    %1696 = vrot.lane.b32.xlu0 %v1362, 8
    %v1697 = vpop.permute.xlu0 %1696
    %1700 = vrot.lane.b32.xlu0 %v1527, 16
    %v1701 = vpop.permute.xlu0 %1700
    %1704 = vrot.lane.b32.xlu0 %v1692, 24
    %v1705 = vpop.permute.xlu0 %1704
    %v1707 = vsel %vm365, %v1196, %v1697
    %v1708 = vsel %vm1035, %v1707, %v1701
    %v1709 = vsel %vm1037, %v1708, %v1705
    %v1710 = vld [vmem:[#allocation10] sm:$0xff]
    %v1711 = vld [vmem:[#allocation10 + $0x8] sm:$0xff]
    %v1712 = vld [vmem:[#allocation10 + $0x10] sm:$0xff]
    %v1713 = vld [vmem:[#allocation10 + $0x18] sm:$0xff]
    %v1714 = vlaneseq
    %v1715 = vshrl.u32 %v1714, 7
    %v1716 = vsub.s32 3, %v1715
    %v1717 = vrot.slane %v106, %v1716
    %v1719 = vsel %vm115, %v1038, 0
    %v1722 = vsel %vm115, %v1709, 0
    %1724 = vmatprep.subr.mxu0 0.0
    %1725 = vmatpush1.msra.mxu0 %v1710
    %1726 = vmatprep.subr.mxu0 0.0
    %1727 = vmatpush1.msra.mxu0 %v1711
    %1728 = vmatprep.subr.mxu0 0.0
    %1729 = vmatpush1.msra.mxu0 %v1712
    %1730 = vmatprep.subr.mxu0 0.0
    %1731 = vmatpush1.msra.mxu0 %v1713
    %1732 = vmatprep.subr.mxu0 0.0
    %1733 = vmatpush1.msra.mxu0 0.0
    %1734 = vmatprep.subr.mxu0 0.0
    %1735 = vmatpush1.msra.mxu0 0.0
    %1736 = vmatprep.subr.mxu0 0.0
    %1737 = vmatpush1.msra.mxu0 0.0
    %1738 = vmatprep.subr.mxu0 0.0
    %1739 = vmatpush1.msra.mxu0 0.0
    %1740 = vmatprep.subr.mxu0 0.0
    %1741 = vmatpush1.msra.mxu0 0.0
    %1742 = vmatprep.subr.mxu0 0.0
    %1743 = vmatpush1.msra.mxu0 0.0
    %1744 = vmatprep.subr.mxu0 0.0
    %1745 = vmatpush1.msra.mxu0 0.0
    %1746 = vmatprep.subr.mxu0 0.0
    %1747 = vmatpush1.msra.mxu0 0.0
    %1748 = vmatprep.subr.mxu0 0.0
    %1749 = vmatpush1.msra.mxu0 0.0
    %1750 = vmatprep.subr.mxu0 0.0
    %1751 = vmatpush1.msra.mxu0 0.0
    %1752 = vmatprep.subr.mxu0 0.0
    %1753 = vmatpush1.msra.mxu0 0.0
    %1754 = vmatprep.subr.mxu0 0.0
    %1755 = vmatpush1.msra.mxu0 0.0
    %1756 = vmatprep.subr.mxu0 0.0
    %1757 = vmatpush1.msra.mxu0 0.0
    %1758 = vmatprep.subr.mxu0 0.0
    %1759 = vmatpush1.msra.mxu0 0.0
    %1760 = vmatprep.subr.mxu0 0.0
    %1761 = vmatpush1.msra.mxu0 0.0
    %1762 = vmatprep.subr.mxu0 0.0
    %1763 = vmatpush1.msra.mxu0 0.0
    %1764 = vmatprep.subr.mxu0 0.0
    %1765 = vmatpush1.msra.mxu0 0.0
    %1766 = vmatprep.subr.mxu0 0.0
    %1767 = vmatpush1.msra.mxu0 0.0
    %1768 = vmatprep.subr.mxu0 0.0
    %1769 = vmatpush1.msra.mxu0 0.0
    %1770 = vmatprep.subr.mxu0 0.0
    %1771 = vmatpush1.msra.mxu0 0.0
    %1772 = vmatprep.subr.mxu0 0.0
    %1773 = vmatpush1.msra.mxu0 0.0
    %1774 = vmatprep.subr.mxu0 0.0
    %1775 = vmatpush1.msra.mxu0 0.0
    %1776 = vmatprep.subr.mxu0 0.0
    %1777 = vmatpush1.msra.mxu0 0.0
    %1778 = vmatprep.subr.mxu0 0.0
    %1779 = vmatpush1.msra.mxu0 0.0
    %1780 = vmatprep.subr.mxu0 0.0
    %1781 = vmatpush1.msra.mxu0 0.0
    %1782 = vmatprep.subr.mxu0 0.0
    %1783 = vmatpush1.msra.mxu0 0.0
    %1784 = vmatprep.subr.mxu0 0.0
    %1785 = vmatpush1.msra.mxu0 0.0
    %1786 = vmatprep.subr.mxu0 0.0
    %1787 = vmatpush1.msra.mxu0 0.0
    %1788 = vmatprep.mubr.f32.mxu0 0.0
    %1789 = vmatmul.mubr.f32.gmra.mrb[0].mxu0 %v1719
    %v1790 = vpop.f32.mrb[0].mxu0
    %v1791 = vadd.f32 %v1717, %v1790
    %v1792 = vpop.f32.mrb[0].mxu0
    %1793 = vmatprep.mubr.f32.mxu0 0.0
    %1794 = vmatmul.mubr.f32.gmra.mrb[0].mxu0 %v1722
    %v1795 = vpop.f32.mrb[0].mxu0
    %v1796 = vadd.f32 %v1717, %v1795
    %v1797 = vpop.f32.mrb[0].mxu0
    %1798 = vdwg.mxu0
    %v1799 = vadd.f32 %v1791, %v104
    %v1800 = vadd.f32 %v1796, %v105
    %v1801 = vsel %vm115, %v1799, 0.0
    %1802 = vadd.xlane.f32.xlu0 %v1801
    %v1803 = vpop.xlane.xlu0 %1802
    %v1804 = vsel %vm115, %v1800, 0.0
    %1805 = vadd.xlane.f32.xlu0 %v1804
    %v1806 = vpop.xlane.xlu0 %1805
    %v1807 = vrcp.pop 32.0
    %v1808 = vmul.f32 %v1803, %v1807
    %v1809 = vmul.f32 %v1806, %v1807
    %v1810 = vsub.f32 %v1799, %v1808
    %v1811 = vsub.f32 %v1800, %v1809
    %v1812 = vmul.f32 %v1810, %v1810
    %v1813 = vmul.f32 %v1811, %v1811
    %v1814 = vsel %vm115, %v1812, 0.0
    %1815 = vadd.xlane.f32.xlu0 %v1814
    %v1816 = vpop.xlane.xlu0 %1815
    %v1817 = vsel %vm115, %v1813, 0.0
    %1818 = vadd.xlane.f32.xlu0 %v1817
    %v1819 = vpop.xlane.xlu0 %1818
    %v1820 = vmul.f32 %v1816, %v1807
    %v1821 = vmul.f32 %v1819, %v1807
    %v1822 = vadd.f32 %v1820, 1e-12
    %v1823 = vadd.f32 %v1821, 1e-12
    %v1824 = vrsqrt.pop %v1822
    %v1825 = vrsqrt.pop %v1823
    %v1826 = vmul.f32 %v1810, %v1824
    %v1827 = vmul.f32 %v1811, %v1825
    %v1828 = vlaneseq
    %v1829 = vshrl.u32 %v1828, 7
    %v1830 = vsub.s32 4, %v1829
    %v1831 = vrot.slane %v106, %v1830
    %v1832 = vmul.f32 %v1826, %v1831
    %v1833 = vmul.f32 %v1827, %v1831
    %v1834 = vlaneseq
    %v1835 = vshrl.u32 %v1834, 7
    %v1836 = vsub.s32 5, %v1835
    %v1837 = vrot.slane %v106, %v1836
    %v1838 = vadd.f32 %v1832, %v1837
    %v1839 = vadd.f32 %v1833, %v1837
    %1840 = vst.msk [vmem:[#allocation13] sm:$0xff] %vm115, %v1838
    %1841 = vst.msk [vmem:[#allocation13 + $0x8] sm:$0xff] %vm115, %v1839
    // Predicated region
    $region50: #{tpu_custom_call.1} parent=1 // pred_check
      _
    $region51: #{tpu_custom_call.1} parent=1 // pred_check_branch
      %1843 = sbr.rel (0) target = $region53
    $region52: #{tpu_custom_call.1} parent=1 // pred_region
      %s1845 = ssub.s32 256, 256
      %1846 = vsyncadd [#allocation4], %s1845
      %s1847 = sshll.u32 [#allocation13], 4
      %s1848 = int_to_ptr.vmem [resolvable:$true] %s1847
      %1853 = dma.vmem_to_hbm [thread:$0]  %s1848, 256, %s6, [#allocation4], 128, 128, 8
    $region53: #{tpu_custom_call.1} parent=1 // pred_fallthru
      _
    // Predicated region
    $region54: #{tpu_custom_call.1} parent=1 // pred_check
      _
    $region55: #{tpu_custom_call.1} parent=1 // pred_check_branch
      %1855 = sbr.rel (0) target = $region57
    $region56: #{tpu_custom_call.1} parent=1 // pred_region
      %1856 = dma.done [#allocation4], 256
    $region57: #{tpu_custom_call.1} parent=1 // pred_fallthru
      _
    %1857 = vsyncpa [#allocation3], 1
    %1858 = vsyncpa [#allocation6], 1
    %1859 = vsyncpa [#allocation9], 1
    %1860 = vsyncpa [#allocation12], 1
    %1861 = vsyncpa [#allocation4], 1

</llo_original>
